<compile_context>
chip_gen: v7x
topology: tpu7x:2x2x1
jax: 0.10.0
libtpu: 0.0.40
codegen_flags: <defaults>
</compile_context>

<pallas_src>
import functools

import jax
import jax.numpy as jnp
from jax import lax
from jax.experimental import pallas as pl
from jax.experimental.pallas import tpu as pltpu


def _dense_block_kernel(x_ref, scale_ref, bias_ref, w_ref, p_ref, cb_ref, o_ref):
    # x_ref:     (nb, H, W*Cin)            raw NHWC rows for nb images
    # scale_ref: (1, W*Cin)                folded BN scale per lane (w*Cin + c)
    # bias_ref:  (1, W*Cin)                folded BN bias  per lane
    # w_ref:     (3, W*Cin, W*(Cin+Cout))  bf16 banded conv weights, one per kh
    #                                      tap; conv values at lanes
    #                                      w*(Cin+Cout)+Cin+k, zeros elsewhere
    # p_ref:     (W*Cin, W*(Cin+Cout))     0/1 placement matrix: raw-x passthrough
    # cb_ref:    (1, W*(Cin+Cout))         conv bias at conv lanes, 0 elsewhere
    # o_ref:     (nb, H, W*(Cin+Cout))     fused (x ++ conv) output, lane-dense
    H = x_ref.shape[1]

    x = x_ref[...]
    # BN affine + ReLU in f32 on the VPU; bf16 only at the MXU input (v5e note).
    a = jnp.maximum(x * scale_ref[...] + bias_ref[...], 0.0)

    # In-kernel h-padding: two zero rows (w-padding is folded into the band).
    zrow = jnp.zeros_like(a[:, :1, :])
    ap = jnp.concatenate([zrow, a, zrow], axis=1)            # (nb, H+2, W*Cin)

    # 3x3 conv as three banded matmuls (one per kh tap), issued back-to-back
    # into a single f32 accumulator.  MXU inputs bf16, M = nb*H (= 128 here).
    acc = jnp.einsum('bhk,kn->bhn',
                     ap[:, 0:H, :].astype(jnp.bfloat16), w_ref[0],
                     preferred_element_type=jnp.float32)
    acc += jnp.einsum('bhk,kn->bhn',
                      ap[:, 1:H + 1, :].astype(jnp.bfloat16), w_ref[1],
                      preferred_element_type=jnp.float32)
    acc += jnp.einsum('bhk,kn->bhn',
                      ap[:, 2:H + 2, :].astype(jnp.bfloat16), w_ref[2],
                      preferred_element_type=jnp.float32)

    # Fused channel concat: scatter the raw input channels into the passthrough
    # lanes via an exact 0/1 placement matmul (HIGHEST precision keeps x exact).
    acc += jnp.einsum('bhk,kn->bhn', x, p_ref[...],
                      precision=lax.Precision.HIGHEST,
                      preferred_element_type=jnp.float32)

    o_ref[...] = (acc + cb_ref[...]).astype(o_ref.dtype)


def make_dense_block_params(conv_w, conv_b, W):
    """Weight-only prep: banded slab, passthrough placement, bias vector.

    Built ONCE per layer (outside the per-call hot path)."""
    Cout, Cin, KH, KW = conv_w.shape
    assert (KH, KW) == (3, 3)
    Call = Cin + Cout

    # wt[dh, dw, c, k] = conv_w[k, c, dh, dw]
    wt = jnp.transpose(conv_w.astype(jnp.float32), (2, 3, 1, 0))
    dw = jnp.arange(3)[:, None, None]
    wi = jnp.arange(W)[None, :, None]
    wo = jnp.arange(W)[None, None, :]
    shift = (wi - wo + 1 == dw).astype(jnp.float32)           # (3, W, W)
    # band[dh, w_in*Cin + c, w_out*Call + Cin + k] = conv_w[k, c, dh, w_in-w_out+1]
    band = jnp.einsum('dio,hdck->hicok', shift, wt)           # (3, W, Cin, W, Cout)
    band = jnp.pad(band, ((0, 0), (0, 0), (0, 0), (0, 0), (Cin, 0)))
    band = band.reshape(3, W * Cin, W * Call).astype(jnp.bfloat16)

    # place[w*Cin + c, w*Call + c] = 1  (raw-x passthrough into the fused output)
    place = jnp.einsum('wo,cd->wcod',
                       jnp.eye(W, dtype=jnp.float32),
                       jnp.eye(Cin, dtype=jnp.float32))
    place = jnp.pad(place, ((0, 0), (0, 0), (0, 0), (0, Cout)))
    place = place.reshape(W * Cin, W * Call)

    cbias = jnp.tile(
        jnp.concatenate([jnp.zeros((Cin,), jnp.float32),
                         conv_b.astype(jnp.float32)]), W).reshape(1, W * Call)
    return band, place, cbias


@functools.partial(jax.jit, static_argnames=("nb", "eps"))
def dense_block2d(x_nchw, gamma, beta, band, place, cbias, *, nb=8, eps=1e-5):
    """x_nchw: (N, Cin, H, W).  Returns (N, Cin + Cout, H, W) float32."""
    N, Cin, H, W = x_nchw.shape
    Call = cbias.shape[-1] // W
    assert N % nb == 0, (N, nb)

    x = x_nchw.astype(jnp.float32)

    # Training-mode BatchNorm2d statistics in ONE fused pass over x
    # (E[x], E[x^2]; clamp var at 0 against cancellation).
    mean = jnp.mean(x, axis=(0, 2, 3))
    var = jnp.maximum(jnp.mean(x * x, axis=(0, 2, 3)) - mean * mean, 0.0)
    scale = gamma.astype(jnp.float32) * lax.rsqrt(var + eps)
    bias = beta.astype(jnp.float32) - mean * scale
    scale_t = jnp.tile(scale, W).reshape(1, W * Cin)          # lane = w*Cin + c
    bias_t = jnp.tile(bias, W).reshape(1, W * Cin)

    # NHWC rows; no separate zero-pad copy (borders handled in-kernel / in-band).
    xr = jnp.transpose(x, (0, 2, 3, 1)).reshape(N, H, W * Cin)

    wcin = W * Cin
    ncol = W * Call
    flops = 2 * N * H * wcin * ncol * 4          # 3 conv taps + placement matmul
    bytes_accessed = (4 * (xr.size + N * H * ncol)
                      + 2 * band.size + 4 * place.size
                      + 4 * (scale_t.size + bias_t.size + cbias.size))

    out = pl.pallas_call(
        _dense_block_kernel,
        out_shape=jax.ShapeDtypeStruct((N, H, ncol), jnp.float32),
        grid_spec=pltpu.PrefetchScalarGridSpec(
            num_scalar_prefetch=0,
            grid=(N // nb,),                                   # nb images / step
            in_specs=[
                pl.BlockSpec((nb, H, wcin), lambda n: (n, 0, 0)),   # NHWC rows
                pl.BlockSpec((1, wcin), lambda n: (0, 0)),          # BN scale
                pl.BlockSpec((1, wcin), lambda n: (0, 0)),          # BN bias
                # Constant-index blocks below are fetched once and stay in VMEM.
                pl.BlockSpec((3, wcin, ncol), lambda n: (0, 0, 0)),  # banded W (bf16)
                pl.BlockSpec((wcin, ncol), lambda n: (0, 0)),        # placement
                pl.BlockSpec((1, ncol), lambda n: (0, 0)),           # conv bias
            ],
            out_specs=pl.BlockSpec((nb, H, ncol), lambda n: (n, 0, 0)),
        ),
        compiler_params=pltpu.CompilerParams(
            dimension_semantics=("parallel",)),
        cost_estimate=pl.CostEstimate(flops=flops, transcendentals=0,
                                      bytes_accessed=bytes_accessed),
    )(xr, scale_t, bias_t, band, place, cbias)

    # Channel concat is already fused into the lane layout; only one
    # NHWC -> NCHW transpose of the fused output remains (no jnp.concatenate).
    return jnp.transpose(out.reshape(N, H, W, Call), (0, 3, 1, 2))


def _reference(x_nchw, gamma, beta, conv_w, conv_b, eps=1e-5):
    x = x_nchw.astype(jnp.float32)
    mean = jnp.mean(x, axis=(0, 2, 3), keepdims=True)
    var = jnp.mean((x - mean) ** 2, axis=(0, 2, 3), keepdims=True)
    xn = (x - mean) / jnp.sqrt(var + eps)
    xn = xn * gamma.reshape(1, -1, 1, 1) + beta.reshape(1, -1, 1, 1)
    a = jnp.maximum(xn, 0.0)
    out = lax.conv_general_dilated(
        a, conv_w.astype(jnp.float32), window_strides=(1, 1), padding="SAME",
        dimension_numbers=("NCHW", "OIHW", "NCHW"))
    out = out + conv_b.reshape(1, -1, 1, 1)
    return jnp.concatenate([x, out], axis=1)


if __name__ == "__main__":
    # Dense_Block2D(in_channels=4, growthRate=8).  The module's forward reshapes
    # (batch, z_dim=20) slices into an effective 2D batch of batch*20, so N=32
    # images of 16x16 is representative; nb=8 per grid step -> grid of 4
    # "parallel" steps (>= 2 per v7x TensorCore) with M = nb*H = 128.
    N, Cin, H, W = 32, 4, 16, 16
    growth = 8

    key = jax.random.PRNGKey(0)
    kx, kg, kb, kw, kcb = jax.random.split(key, 5)
    x = jax.random.normal(kx, (N, Cin, H, W), dtype=jnp.float32)
    gamma = jax.random.normal(kg, (Cin,), dtype=jnp.float32) * 0.1 + 1.0
    beta = jax.random.normal(kb, (Cin,), dtype=jnp.float32) * 0.1
    conv_w = jax.random.normal(kw, (growth, Cin, 3, 3), dtype=jnp.float32) * 0.1
    conv_b = jax.random.normal(kcb, (growth,), dtype=jnp.float32) * 0.1

    # Weight-only prep: built once, reused by every call (not re-traced per call).
    band, place, cbias = make_dense_block_params(conv_w, conv_b, W)

    y = dense_block2d(x, gamma, beta, band, place, cbias, nb=8)
    y = jax.block_until_ready(y)

    y_ref = _reference(x, gamma, beta, conv_w, conv_b)
    assert y.shape == (N, Cin + growth, H, W), y.shape
    max_err = float(jnp.max(jnp.abs(y - y_ref)))
    # bf16 MXU inputs with f32 accumulation -> looser tolerance than the f32 path.
    assert jnp.allclose(y, y_ref, atol=3e-2, rtol=3e-2), max_err

    print("KERNEL_OK")
</pallas_src>

<mosaic_0001>
module attributes {stable_mosaic.version = 11 : i64} {
  func.func @_dense_block_kernel(%arg0: i32, %arg1: memref<8x16x64xf32, #tpu.memory_space<vmem>>, %arg2: memref<1x64xf32, #tpu.memory_space<vmem>>, %arg3: memref<1x64xf32, #tpu.memory_space<vmem>>, %arg4: memref<3x64x192xbf16, #tpu.memory_space<vmem>>, %arg5: memref<64x192xf32, #tpu.memory_space<vmem>>, %arg6: memref<1x192xf32, #tpu.memory_space<vmem>>, %arg7: memref<8x16x192xf32, #tpu.memory_space<vmem>>) attributes {dimension_semantics = [#tpu.dimension_semantics<parallel>], iteration_bounds = array<i64: 4>, scalar_prefetch = 0 : i64, scratch_operands = 0 : i64, tpu.core_type = #tpu.core_type<tc>, window_params = [{transform_indices = @transform_0, window_bounds = array<i64: 8, 16, 64>}, {pipeline_mode = #tpu.pipeline_mode<synchronous>, transform_indices = @transform_1, window_bounds = array<i64: 1, 64>}, {pipeline_mode = #tpu.pipeline_mode<synchronous>, transform_indices = @transform_2, window_bounds = array<i64: 1, 64>}, {pipeline_mode = #tpu.pipeline_mode<synchronous>, transform_indices = @transform_3, window_bounds = array<i64: 3, 64, 192>}, {pipeline_mode = #tpu.pipeline_mode<synchronous>, transform_indices = @transform_4, window_bounds = array<i64: 64, 192>}, {pipeline_mode = #tpu.pipeline_mode<synchronous>, transform_indices = @transform_5, window_bounds = array<i64: 1, 192>}, {transform_indices = @transform_6, window_bounds = array<i64: 8, 16, 192>}]} {
    %c0 = arith.constant 0 : index
    %c0_0 = arith.constant 0 : index
    %c0_1 = arith.constant 0 : index
    %0 = vector.load %arg1[%c0, %c0_0, %c0_1] : memref<8x16x64xf32, #tpu.memory_space<vmem>>, vector<8x16x64xf32>
    %c0_2 = arith.constant 0 : index
    %c0_3 = arith.constant 0 : index
    %1 = vector.load %arg2[%c0_2, %c0_3] : memref<1x64xf32, #tpu.memory_space<vmem>>, vector<1x64xf32>
    %2 = vector.shape_cast %1 : vector<1x64xf32> to vector<1x1x64xf32>
    %3 = vector.broadcast %2 : vector<1x1x64xf32> to vector<8x16x64xf32>
    %4 = arith.mulf %0, %3 : vector<8x16x64xf32>
    %c0_4 = arith.constant 0 : index
    %c0_5 = arith.constant 0 : index
    %5 = vector.load %arg3[%c0_4, %c0_5] : memref<1x64xf32, #tpu.memory_space<vmem>>, vector<1x64xf32>
    %6 = vector.shape_cast %5 : vector<1x64xf32> to vector<1x1x64xf32>
    %7 = vector.broadcast %6 : vector<1x1x64xf32> to vector<8x16x64xf32>
    %8 = arith.addf %4, %7 : vector<8x16x64xf32>
    %cst = arith.constant 0.000000e+00 : f32
    %9 = vector.broadcast %cst : f32 to vector<8x16x64xf32>
    %10 = arith.maximumf %8, %9 : vector<8x16x64xf32>
    %cst_6 = arith.constant 0.000000e+00 : f32
    %11 = vector.broadcast %cst_6 : f32 to vector<8x1x64xf32>
    %12 = tpu.concatenate %11, %10, %11 in 1 : vector<8x1x64xf32>, vector<8x16x64xf32>, vector<8x1x64xf32> -> vector<8x18x64xf32>
    %13 = vector.extract_strided_slice %12 {offsets = [0, 0, 0], sizes = [8, 16, 64], strides = [1, 1, 1]} : vector<8x18x64xf32> to vector<8x16x64xf32>
    %14 = arith.truncf %13 : vector<8x16x64xf32> to vector<8x16x64xbf16>
    %c0_7 = arith.constant 0 : index
    %c0_8 = arith.constant 0 : index
    %c0_9 = arith.constant 0 : index
    %15 = vector.load %arg4[%c0_7, %c0_8, %c0_9] : memref<3x64x192xbf16, #tpu.memory_space<vmem>>, vector<1x64x192xbf16>
    %16 = vector.shape_cast %15 : vector<1x64x192xbf16> to vector<64x192xbf16>
    "tpu.trace_start"() <{level = 10 : i32, message = "bhk,kn->bhn"}> : () -> ()
    %cst_10 = arith.constant dense<0.000000e+00> : vector<8x16x192xf32>
    %17 = tpu.matmul %14, %16, %cst_10 {dimension_numbers = #tpu.dot_dimension_numbers<[2], [0], [0, 1], [1], [0, 0, 0, 1, 1, 1], [], []>} : vector<8x16x64xbf16>, vector<64x192xbf16>, vector<8x16x192xf32> -> vector<8x16x192xf32>
    "tpu.trace_stop"() : () -> ()
    %18 = vector.extract_strided_slice %12 {offsets = [0, 1, 0], sizes = [8, 16, 64], strides = [1, 1, 1]} : vector<8x18x64xf32> to vector<8x16x64xf32>
    %19 = arith.truncf %18 : vector<8x16x64xf32> to vector<8x16x64xbf16>
    %c1 = arith.constant 1 : index
    %c0_11 = arith.constant 0 : index
    %c0_12 = arith.constant 0 : index
    %20 = vector.load %arg4[%c1, %c0_11, %c0_12] : memref<3x64x192xbf16, #tpu.memory_space<vmem>>, vector<1x64x192xbf16>
    %21 = vector.shape_cast %20 : vector<1x64x192xbf16> to vector<64x192xbf16>
    "tpu.trace_start"() <{level = 10 : i32, message = "bhk,kn->bhn"}> : () -> ()
    %cst_13 = arith.constant dense<0.000000e+00> : vector<8x16x192xf32>
    %22 = tpu.matmul %19, %21, %cst_13 {dimension_numbers = #tpu.dot_dimension_numbers<[2], [0], [0, 1], [1], [0, 0, 0, 1, 1, 1], [], []>} : vector<8x16x64xbf16>, vector<64x192xbf16>, vector<8x16x192xf32> -> vector<8x16x192xf32>
    "tpu.trace_stop"() : () -> ()
    %23 = arith.addf %17, %22 : vector<8x16x192xf32>
    %24 = vector.extract_strided_slice %12 {offsets = [0, 2, 0], sizes = [8, 16, 64], strides = [1, 1, 1]} : vector<8x18x64xf32> to vector<8x16x64xf32>
    %25 = arith.truncf %24 : vector<8x16x64xf32> to vector<8x16x64xbf16>
    %c2 = arith.constant 2 : index
    %c0_14 = arith.constant 0 : index
    %c0_15 = arith.constant 0 : index
    %26 = vector.load %arg4[%c2, %c0_14, %c0_15] : memref<3x64x192xbf16, #tpu.memory_space<vmem>>, vector<1x64x192xbf16>
    %27 = vector.shape_cast %26 : vector<1x64x192xbf16> to vector<64x192xbf16>
    "tpu.trace_start"() <{level = 10 : i32, message = "bhk,kn->bhn"}> : () -> ()
    %cst_16 = arith.constant dense<0.000000e+00> : vector<8x16x192xf32>
    %28 = tpu.matmul %25, %27, %cst_16 {dimension_numbers = #tpu.dot_dimension_numbers<[2], [0], [0, 1], [1], [0, 0, 0, 1, 1, 1], [], []>} : vector<8x16x64xbf16>, vector<64x192xbf16>, vector<8x16x192xf32> -> vector<8x16x192xf32>
    "tpu.trace_stop"() : () -> ()
    %29 = arith.addf %23, %28 : vector<8x16x192xf32>
    %c0_17 = arith.constant 0 : index
    %c0_18 = arith.constant 0 : index
    %30 = vector.load %arg5[%c0_17, %c0_18] : memref<64x192xf32, #tpu.memory_space<vmem>>, vector<64x192xf32>
    "tpu.trace_start"() <{level = 10 : i32, message = "bhk,kn->bhn"}> : () -> ()
    %cst_19 = arith.constant dense<0.000000e+00> : vector<8x16x192xf32>
    %31 = tpu.matmul %0, %30, %cst_19 {dimension_numbers = #tpu.dot_dimension_numbers<[2], [0], [0, 1], [1], [0, 0, 0, 1, 1, 1], [], []>, precision = #tpu.contract_precision<fp32>} : vector<8x16x64xf32>, vector<64x192xf32>, vector<8x16x192xf32> -> vector<8x16x192xf32>
    "tpu.trace_stop"() : () -> ()
    %32 = arith.addf %29, %31 : vector<8x16x192xf32>
    %c0_20 = arith.constant 0 : index
    %c0_21 = arith.constant 0 : index
    %33 = vector.load %arg6[%c0_20, %c0_21] : memref<1x192xf32, #tpu.memory_space<vmem>>, vector<1x192xf32>
    %34 = vector.shape_cast %33 : vector<1x192xf32> to vector<1x1x192xf32>
    %35 = vector.broadcast %34 : vector<1x1x192xf32> to vector<8x16x192xf32>
    %36 = arith.addf %32, %35 : vector<8x16x192xf32>
    %c0_22 = arith.constant 0 : index
    %c0_23 = arith.constant 0 : index
    %c0_24 = arith.constant 0 : index
    %37 = vector.load %arg7[%c0_22, %c0_23, %c0_24] : memref<8x16x192xf32, #tpu.memory_space<vmem>>, vector<8x16x192xf32>
    tpu.vector_store %arg7[%c0_22, %c0_23, %c0_24], %36 {strides = array<i32>} : memref<8x16x192xf32, #tpu.memory_space<vmem>>, vector<8x16x192xf32>,
    return
  }
  func.func @transform_0(%arg0: i32) -> (i32, i32, i32) {
    %c0_i32 = arith.constant 0 : i32
    %c0_i32_0 = arith.constant 0 : i32
    %c0_i32_1 = arith.constant 0 : i32
    return %arg0, %c0_i32, %c0_i32_0 : i32, i32, i32
  }
  func.func @transform_1(%arg0: i32) -> (i32, i32) {
    %c0_i32 = arith.constant 0 : i32
    %c0_i32_0 = arith.constant 0 : i32
    %c0_i32_1 = arith.constant 0 : i32
    return %c0_i32, %c0_i32_0 : i32, i32
  }
  func.func @transform_2(%arg0: i32) -> (i32, i32) {
    %c0_i32 = arith.constant 0 : i32
    %c0_i32_0 = arith.constant 0 : i32
    %c0_i32_1 = arith.constant 0 : i32
    return %c0_i32, %c0_i32_0 : i32, i32
  }
  func.func @transform_3(%arg0: i32) -> (i32, i32, i32) {
    %c0_i32 = arith.constant 0 : i32
    %c0_i32_0 = arith.constant 0 : i32
    %c0_i32_1 = arith.constant 0 : i32
    %c0_i32_2 = arith.constant 0 : i32
    return %c0_i32, %c0_i32_0, %c0_i32_1 : i32, i32, i32
  }
  func.func @transform_4(%arg0: i32) -> (i32, i32) {
    %c0_i32 = arith.constant 0 : i32
    %c0_i32_0 = arith.constant 0 : i32
    %c0_i32_1 = arith.constant 0 : i32
    return %c0_i32, %c0_i32_0 : i32, i32
  }
  func.func @transform_5(%arg0: i32) -> (i32, i32) {
    %c0_i32 = arith.constant 0 : i32
    %c0_i32_0 = arith.constant 0 : i32
    %c0_i32_1 = arith.constant 0 : i32
    return %c0_i32, %c0_i32_0 : i32, i32
  }
  func.func @transform_6(%arg0: i32) -> (i32, i32, i32) {
    %c0_i32 = arith.constant 0 : i32
    %c0_i32_0 = arith.constant 0 : i32
    %c0_i32_1 = arith.constant 0 : i32
    return %arg0, %c0_i32, %c0_i32_0 : i32, i32, i32
  }
}

</mosaic_0001>

<llo_original>
// kernel: tile.18
$region0: #{tile.18}
  #allocation0 [shape = 's32[1]{0}', space=sflag, size = 0x4, scoped, tag = 'scoped memory for tile.18']
  %s0 = inlined_call_operand.vmem [shape: f32[4], index: 0, kind: input, shape index: {}]
  %s1 = inlined_call_operand.vmem [shape: f32[16,4], index: 1, kind: output, shape index: {}]
  // Predicated region
  $region2: #{tile.18} parent=0 // pred_check
    _
  $region3: #{tile.18} parent=0 // pred_check_branch
    %3 = sbr.rel (0) target = $region5
  $region4: #{tile.18} parent=0 // pred_region
    _
  $region5: #{tile.18} parent=0 // pred_fallthru
    _
  %v4 = vld [vmem:[%s0] ss:$0 sm:$0xff]
  %5 = vst [vmem:[%s1] sm:$0xff] %v4
  %s6 = scalar_lea.vmem %s1, 8
  %7 = vst [vmem:[%s6] sm:$0xff] %v4

// kernel: tile.19
$region0: #{tile.19}
  %s0 = inlined_call_operand.vmem [shape: f32[16,4], index: 0, kind: input, shape index: {}]
  %s1 = inlined_call_operand.vmem [shape: f32[1,64], index: 1, kind: output, shape index: {}]
  $region1: #{tile.19} parent=0
    #allocation0 [shape = 'u8[4096]{0}', space=vmem, size = 0x1000, scoped, tag = 'scoped mem for output reshape']
    %v2 = vld [vmem:[%s0] sm:$0x1]
    %vm3 = vcmask 31744
    %4 = vst.msk [vmem:[#allocation0] sm:$0x1] %vm3, %v2
    %s5 = scalar_lea.vmem %s0, 15
    %v6 = vld [vmem:[%s5] sm:$0x1]
    %7 = vrot.lane.b32.xlu0 %v6, 60
    %v8 = vpop.permute.xlu0 %7
    %vm9 = vcmask 523744
    %10 = vst.msk [vmem:[#allocation0] sm:$0x1] %vm9, %v8
    %s11 = scalar_lea.vmem %s0, 14
    %v12 = vld [vmem:[%s11] sm:$0x1]
    %13 = vrot.lane.b32.xlu0 %v12, 56
    %v14 = vpop.permute.xlu0 %13
    %vm15 = vcmask 490944
    %16 = vst.msk [vmem:[#allocation0] sm:$0x1] %vm15, %v14
    %s17 = scalar_lea.vmem %s0, 13
    %v18 = vld [vmem:[%s17] sm:$0x1]
    %19 = vrot.lane.b32.xlu0 %v18, 52
    %v20 = vpop.permute.xlu0 %19
    %vm21 = vcmask 458144
    %22 = vst.msk [vmem:[#allocation0] sm:$0x1] %vm21, %v20
    %s23 = scalar_lea.vmem %s0, 12
    %v24 = vld [vmem:[%s23] sm:$0x1]
    %25 = vrot.lane.b32.xlu0 %v24, 48
    %v26 = vpop.permute.xlu0 %25
    %vm27 = vcmask 425344
    %28 = vst.msk [vmem:[#allocation0] sm:$0x1] %vm27, %v26
    %s29 = scalar_lea.vmem %s0, 11
    %v30 = vld [vmem:[%s29] sm:$0x1]
    %31 = vrot.lane.b32.xlu0 %v30, 44
    %v32 = vpop.permute.xlu0 %31
    %vm33 = vcmask 392544
    %34 = vst.msk [vmem:[#allocation0] sm:$0x1] %vm33, %v32
    %s35 = scalar_lea.vmem %s0, 10
    %v36 = vld [vmem:[%s35] sm:$0x1]
    %37 = vrot.lane.b32.xlu0 %v36, 40
    %v38 = vpop.permute.xlu0 %37
    %vm39 = vcmask 359744
    %40 = vst.msk [vmem:[#allocation0] sm:$0x1] %vm39, %v38
    %s41 = scalar_lea.vmem %s0, 9
    %v42 = vld [vmem:[%s41] sm:$0x1]
    %43 = vrot.lane.b32.xlu0 %v42, 36
    %v44 = vpop.permute.xlu0 %43
    %vm45 = vcmask 326944
    %46 = vst.msk [vmem:[#allocation0] sm:$0x1] %vm45, %v44
    %s47 = scalar_lea.vmem %s0, 8
    %v48 = vld [vmem:[%s47] sm:$0x1]
    %49 = vrot.lane.b32.xlu0 %v48, 32
    %v50 = vpop.permute.xlu0 %49
    %vm51 = vcmask 294144
    %52 = vst.msk [vmem:[#allocation0] sm:$0x1] %vm51, %v50
    %s53 = scalar_lea.vmem %s0, 7
    %v54 = vld [vmem:[%s53] sm:$0x1]
    %55 = vrot.lane.b32.xlu0 %v54, 28
    %v56 = vpop.permute.xlu0 %55
    %vm57 = vcmask 261344
    %58 = vst.msk [vmem:[#allocation0] sm:$0x1] %vm57, %v56
    %s59 = scalar_lea.vmem %s0, 6
    %v60 = vld [vmem:[%s59] sm:$0x1]
    %61 = vrot.lane.b32.xlu0 %v60, 24
    %v62 = vpop.permute.xlu0 %61
    %vm63 = vcmask 228544
    %64 = vst.msk [vmem:[#allocation0] sm:$0x1] %vm63, %v62
    %s65 = scalar_lea.vmem %s0, 5
    %v66 = vld [vmem:[%s65] sm:$0x1]
    %67 = vrot.lane.b32.xlu0 %v66, 20
    %v68 = vpop.permute.xlu0 %67
    %vm69 = vcmask 195744
    %70 = vst.msk [vmem:[#allocation0] sm:$0x1] %vm69, %v68
    %s71 = scalar_lea.vmem %s0, 4
    %v72 = vld [vmem:[%s71] sm:$0x1]
    %73 = vrot.lane.b32.xlu0 %v72, 16
    %v74 = vpop.permute.xlu0 %73
    %vm75 = vcmask 162944
    %76 = vst.msk [vmem:[#allocation0] sm:$0x1] %vm75, %v74
    %s77 = scalar_lea.vmem %s0, 3
    %v78 = vld [vmem:[%s77] sm:$0x1]
    %79 = vrot.lane.b32.xlu0 %v78, 12
    %v80 = vpop.permute.xlu0 %79
    %vm81 = vcmask 130144
    %82 = vst.msk [vmem:[#allocation0] sm:$0x1] %vm81, %v80
    %s83 = scalar_lea.vmem %s0, 2
    %v84 = vld [vmem:[%s83] sm:$0x1]
    %85 = vrot.lane.b32.xlu0 %v84, 8
    %v86 = vpop.permute.xlu0 %85
    %vm87 = vcmask 97344
    %88 = vst.msk [vmem:[#allocation0] sm:$0x1] %vm87, %v86
    %s89 = scalar_lea.vmem %s0, 1
    %v90 = vld [vmem:[%s89] sm:$0x1]
    %91 = vrot.lane.b32.xlu0 %v90, 4
    %v92 = vpop.permute.xlu0 %91
    %vm93 = vcmask 64544
    %94 = vst.msk [vmem:[#allocation0] sm:$0x1] %vm93, %v92
    %s96 = sshllo.u32 0, 1
    %v98 = vld [vmem:[#allocation0] sm:%s96]
    %s99 = sshllo.u32 0, 1
    %100 = vst [vmem:[%s1] sm:%s99] %v98

// kernel: dense_block2d.1
$region0: #{dense_block2d.1}
  #allocation0 [shape = 'u32[]', space=smem, size = 0x4, offset = 0x4, fixed_abs, tag = 'smem constant byte address 0x4 - core index']
  #allocation1 [shape = 'u32[144,128]{1,0:T(1,128)}', space=vmem, size = 0x12000, scoped, tag = 'internal scratch']
  %s0 = inlined_call_operand.vmem [shape: f32[32,16,64], index: 0, kind: input, shape index: {}]
  %s1 = inlined_call_operand.vmem [shape: f32[1,64], index: 1, kind: input, shape index: {}]
  %s2 = inlined_call_operand.vmem [shape: f32[1,64], index: 2, kind: input, shape index: {}]
  %s3 = inlined_call_operand.vmem [shape: bf16[3,64,192], index: 3, kind: input, shape index: {}]
  %s4 = inlined_call_operand.vmem [shape: f32[64,192], index: 4, kind: input, shape index: {}]
  %s5 = inlined_call_operand.vmem [shape: f32[1,192], index: 5, kind: input, shape index: {}]
  %s6 = inlined_call_operand.vmem [shape: f32[32,16,192], index: 6, kind: output, shape index: {}]
  %s7 = sld [smem:[#allocation0]]
  $region57: #{dense_block2d.1} parent=0
    _
  %s9 = ssub.s32 1, %s7
  %s10 = scalar_select 0, %s9, %s7
  loop: start=0, step=1, limit=6
  $region2: #{dense_block2d.1} parent=0 // loop_pre_header
    _
  $region3: #{dense_block2d.1} parent=0 // loop_header
    %s12 = sphi 0, %s16
    %p13 = scmp.ge.s32.totalorder %s12, 6
    %s22 = sphi 0, %s24
    %s25 = sphi 0, %s22
    %s26 = sphi 0, %s25
    %s42 = sphi 0, %s26
    %s46 = sphi 0, %s46
    %s48 = sphi 0, %s46
    %s49 = sphi 0, %s48
    %s63 = sphi 0, %s49
    %s67 = sphi 0, %s67
    %s69 = sphi 0, %s67
    %s70 = sphi 0, %s69
    %s84 = sphi 0, %s70
    %s88 = sphi 0, %s88
    %s90 = sphi 0, %s88
    %s91 = sphi 0, %s90
    %s105 = sphi 0, %s91
    %s109 = sphi 0, %s109
    %s111 = sphi 0, %s109
    %s112 = sphi 0, %s111
    %s126 = sphi 0, %s112
    %s130 = sphi 0, %s130
    %s132 = sphi 0, %s130
    %s133 = sphi 0, %s132
    %s147 = sphi 0, %s133
    %s153 = sphi 0, %s155
    %s156 = sphi 0, %s153
    %s157 = sphi 0, %s156
    %s173 = sphi 0, %s157
  $region4: #{dense_block2d.1} parent=0 // loop_header_branch
    %15 = sbr.rel (%p13) target = $region8
  $region5: #{dense_block2d.1} parent=0 // loop_body
    %s17 = ssub.s32 %s12, 1
    %s18 = ssub.s32 %s12, 2
    %s19 = sadd.s32 %s12, 1
    %s20 = ssub.s32 %s12, %s19
    %p21 = scmp.eq.s32.totalorder %s20, 0
    %s23 = sadd.s32 %s22, 1
    %s24 = scalar_select %p21, %s22, %s23
    %p27 = pneg %p21
    %p28 = scmp.eq.s32.totalorder %s12, 3
    %p29 = por %p27, %p28
    %p30 = scmp.ne.s32.totalorder %s22, %s25
    %p31 = scmp.eq.s32.totalorder %s12, 0
    %p32 = por %p30, %p31
    %p33 = scmp.ne.s32.totalorder %s22, %s25
    %p34 = scmp.eq.s32.totalorder %s17, 3
    %p35 = por %p33, %p34
    %p36 = scmp.ne.s32.totalorder %s25, %s26
    %p37 = scmp.eq.s32.totalorder %s17, 0
    %p38 = por %p36, %p37
    %p39 = scmp.ne.s32.totalorder %s25, %s26
    %p40 = scmp.eq.s32.totalorder %s18, 3
    %p41 = por %p39, %p40
    %p43 = scmp.ne.s32.totalorder %s26, %s42
    %p44 = scmp.eq.s32.totalorder %s18, 0
    %p45 = por %p43, %p44
    %s47 = sadd.s32 %s46, 1
    %p50 = scmp.eq.s32.totalorder %s12, 3
    %p51 = scmp.ne.s32.totalorder %s46, %s48
    %p52 = scmp.eq.s32.totalorder %s12, 0
    %p53 = por %p51, %p52
    %p54 = scmp.ne.s32.totalorder %s46, %s48
    %p55 = scmp.eq.s32.totalorder %s17, 3
    %p56 = por %p54, %p55
    %p57 = scmp.ne.s32.totalorder %s48, %s49
    %p58 = scmp.eq.s32.totalorder %s17, 0
    %p59 = por %p57, %p58
    %p60 = scmp.ne.s32.totalorder %s48, %s49
    %p61 = scmp.eq.s32.totalorder %s18, 3
    %p62 = por %p60, %p61
    %p64 = scmp.ne.s32.totalorder %s49, %s63
    %p65 = scmp.eq.s32.totalorder %s18, 0
    %p66 = por %p64, %p65
    %s68 = sadd.s32 %s67, 1
    %p71 = scmp.eq.s32.totalorder %s12, 3
    %p72 = scmp.ne.s32.totalorder %s67, %s69
    %p73 = scmp.eq.s32.totalorder %s12, 0
    %p74 = por %p72, %p73
    %p75 = scmp.ne.s32.totalorder %s67, %s69
    %p76 = scmp.eq.s32.totalorder %s17, 3
    %p77 = por %p75, %p76
    %p78 = scmp.ne.s32.totalorder %s69, %s70
    %p79 = scmp.eq.s32.totalorder %s17, 0
    %p80 = por %p78, %p79
    %p81 = scmp.ne.s32.totalorder %s69, %s70
    %p82 = scmp.eq.s32.totalorder %s18, 3
    %p83 = por %p81, %p82
    %p85 = scmp.ne.s32.totalorder %s70, %s84
    %p86 = scmp.eq.s32.totalorder %s18, 0
    %p87 = por %p85, %p86
    %s89 = sadd.s32 %s88, 1
    %p92 = scmp.eq.s32.totalorder %s12, 3
    %p93 = scmp.ne.s32.totalorder %s88, %s90
    %p94 = scmp.eq.s32.totalorder %s12, 0
    %p95 = por %p93, %p94
    %p96 = scmp.ne.s32.totalorder %s88, %s90
    %p97 = scmp.eq.s32.totalorder %s17, 3
    %p98 = por %p96, %p97
    %p99 = scmp.ne.s32.totalorder %s90, %s91
    %p100 = scmp.eq.s32.totalorder %s17, 0
    %p101 = por %p99, %p100
    %p102 = scmp.ne.s32.totalorder %s90, %s91
    %p103 = scmp.eq.s32.totalorder %s18, 3
    %p104 = por %p102, %p103
    %p106 = scmp.ne.s32.totalorder %s91, %s105
    %p107 = scmp.eq.s32.totalorder %s18, 0
    %p108 = por %p106, %p107
    %s110 = sadd.s32 %s109, 1
    %p113 = scmp.eq.s32.totalorder %s12, 3
    %p114 = scmp.ne.s32.totalorder %s109, %s111
    %p115 = scmp.eq.s32.totalorder %s12, 0
    %p116 = por %p114, %p115
    %p117 = scmp.ne.s32.totalorder %s109, %s111
    %p118 = scmp.eq.s32.totalorder %s17, 3
    %p119 = por %p117, %p118
    %p120 = scmp.ne.s32.totalorder %s111, %s112
    %p121 = scmp.eq.s32.totalorder %s17, 0
    %p122 = por %p120, %p121
    %p123 = scmp.ne.s32.totalorder %s111, %s112
    %p124 = scmp.eq.s32.totalorder %s18, 3
    %p125 = por %p123, %p124
    %p127 = scmp.ne.s32.totalorder %s112, %s126
    %p128 = scmp.eq.s32.totalorder %s18, 0
    %p129 = por %p127, %p128
    %s131 = sadd.s32 %s130, 1
    %p134 = scmp.eq.s32.totalorder %s12, 3
    %p135 = scmp.ne.s32.totalorder %s130, %s132
    %p136 = scmp.eq.s32.totalorder %s12, 0
    %p137 = por %p135, %p136
    %p138 = scmp.ne.s32.totalorder %s130, %s132
    %p139 = scmp.eq.s32.totalorder %s17, 3
    %p140 = por %p138, %p139
    %p141 = scmp.ne.s32.totalorder %s132, %s133
    %p142 = scmp.eq.s32.totalorder %s17, 0
    %p143 = por %p141, %p142
    %p144 = scmp.ne.s32.totalorder %s132, %s133
    %p145 = scmp.eq.s32.totalorder %s18, 3
    %p146 = por %p144, %p145
    %p148 = scmp.ne.s32.totalorder %s133, %s147
    %p149 = scmp.eq.s32.totalorder %s18, 0
    %p150 = por %p148, %p149
    %s151 = ssub.s32 %s12, %s19
    %p152 = scmp.eq.s32.totalorder %s151, 0
    %s154 = sadd.s32 %s153, 1
    %s155 = scalar_select %p152, %s153, %s154
    %p158 = pneg %p152
    %p159 = scmp.eq.s32.totalorder %s12, 3
    %p160 = por %p158, %p159
    %p161 = scmp.ne.s32.totalorder %s153, %s156
    %p162 = scmp.eq.s32.totalorder %s12, 0
    %p163 = por %p161, %p162
    %p164 = scmp.ne.s32.totalorder %s153, %s156
    %p165 = scmp.eq.s32.totalorder %s17, 3
    %p166 = por %p164, %p165
    %p167 = scmp.ne.s32.totalorder %s156, %s157
    %p168 = scmp.eq.s32.totalorder %s17, 0
    %p169 = por %p167, %p168
    %p170 = scmp.ne.s32.totalorder %s156, %s157
    %p171 = scmp.eq.s32.totalorder %s18, 3
    %p172 = por %p170, %p171
    %p174 = scmp.ne.s32.totalorder %s157, %s173
    %p175 = scmp.eq.s32.totalorder %s18, 0
    %p176 = por %p174, %p175
    %p177 = scmp.le.s32.totalorder 1, %s12
    %p178 = scmp.lt.s32.totalorder %s12, 5
    %p179 = pnand %p177, %p178
    %p180 = pneg %p179
    // Predicated region
    $region9: #{dense_block2d.1} parent=5 // pred_check
      _
    $region10: #{dense_block2d.1} parent=5 // pred_check_branch
      %182 = sbr.rel (%p179) target = $region12
    $region11: #{dense_block2d.1} parent=5 // pred_region
      %s183 = ssub.s32 %s12, 1
      // Predicated region
      $region13: #{dense_block2d.1} parent=11 // pred_check
        %p184 = pneg %p59
      $region14: #{dense_block2d.1} parent=11 // pred_check_branch
        %186 = sbr.rel (%p184) target = $region16
      $region15: #{dense_block2d.1} parent=11 // pred_region
        _
      $region16: #{dense_block2d.1} parent=11 // pred_fallthru
        _
      // Predicated region
      $region17: #{dense_block2d.1} parent=11 // pred_check
        %p187 = pneg %p80
      $region18: #{dense_block2d.1} parent=11 // pred_check_branch
        %189 = sbr.rel (%p187) target = $region20
      $region19: #{dense_block2d.1} parent=11 // pred_region
        _
      $region20: #{dense_block2d.1} parent=11 // pred_fallthru
        _
      // Predicated region
      $region21: #{dense_block2d.1} parent=11 // pred_check
        %p190 = pneg %p101
      $region22: #{dense_block2d.1} parent=11 // pred_check_branch
        %192 = sbr.rel (%p190) target = $region24
      $region23: #{dense_block2d.1} parent=11 // pred_region
        _
      $region24: #{dense_block2d.1} parent=11 // pred_fallthru
        _
      // Predicated region
      $region25: #{dense_block2d.1} parent=11 // pred_check
        %p193 = pneg %p122
      $region26: #{dense_block2d.1} parent=11 // pred_check_branch
        %195 = sbr.rel (%p193) target = $region28
      $region27: #{dense_block2d.1} parent=11 // pred_region
        _
      $region28: #{dense_block2d.1} parent=11 // pred_fallthru
        _
      // Predicated region
      $region29: #{dense_block2d.1} parent=11 // pred_check
        %p196 = pneg %p143
      $region30: #{dense_block2d.1} parent=11 // pred_check_branch
        %198 = sbr.rel (%p196) target = $region32
      $region31: #{dense_block2d.1} parent=11 // pred_region
        _
      $region32: #{dense_block2d.1} parent=11 // pred_fallthru
        _
    $region12: #{dense_block2d.1} parent=5 // pred_fallthru
      _
    %p199 = scmp.lt.s32.totalorder %s12, 4
    // Predicated region
    $region33: #{dense_block2d.1} parent=5 // pred_check
      %p200 = pneg %p199
    $region34: #{dense_block2d.1} parent=5 // pred_check_branch
      %202 = sbr.rel (%p200) target = $region36
    $region35: #{dense_block2d.1} parent=5 // pred_region
      // Predicated region
      $region37: #{dense_block2d.1} parent=35 // pred_check
        %p203 = pneg %p32
      $region38: #{dense_block2d.1} parent=35 // pred_check_branch
        %205 = sbr.rel (%p203) target = $region40
      $region39: #{dense_block2d.1} parent=35 // pred_region
        %s206 = smul.u32 8, %s12
        %p207 = scmp.lt.s32.totalorder %s206, 31
        %s208 = scalar_select %p207, %s206, 31
        %s209 = smul.addr %s208, 2
        %s210 = smul.addr %s209, 8
        %s211 = scalar_lea.vmem %s0, %s210
        %s212 = smul.u32 8, %s12
      $region40: #{dense_block2d.1} parent=35 // pred_fallthru
        _
    $region36: #{dense_block2d.1} parent=5 // pred_fallthru
      _
    %p213 = scmp.le.s32.totalorder 1, %s12
    %p214 = scmp.lt.s32.totalorder %s12, 5
    %p215 = pnand %p213, %p214
    %p216 = pneg %p215
    // Predicated region
    $region41: #{dense_block2d.1} parent=5 // pred_check
      _
    $region42: #{dense_block2d.1} parent=5 // pred_check_branch
      %218 = sbr.rel (%p215) target = $region44
    $region43: #{dense_block2d.1} parent=5 // pred_region
      %s219 = ssub.s32 %s12, 1
      %s220 = smul.u32 8, %s17
      %p221 = scmp.lt.s32.totalorder %s220, 31
      %s222 = scalar_select %p221, %s220, 31
      %s223 = smul.addr %s222, 2
      %s224 = smul.addr %s223, 8
      %s225 = scalar_lea.vmem %s0, %s224
      %p226 = pneg %p38
      %p227 = pneg %p35
      %p228 = pneg %p59
      %p229 = pneg %p56
      %p230 = pneg %p80
      %p231 = pneg %p77
      %p232 = pneg %p101
      %p233 = pneg %p98
      %p234 = pneg %p122
      %p235 = pneg %p119
      %p236 = pneg %p143
      %p237 = pneg %p140
      %p238 = pneg %p169
      %p239 = pneg %p166
      %s240 = smul.u32 8, %s17
      %p241 = scmp.lt.s32.totalorder %s240, 31
      %s242 = scalar_select %p241, %s240, 31
      %s243 = smul.addr %s242, 4
      %s244 = smul.addr %s243, 8
      %s245 = scalar_lea.vmem %s6, %s244
      %s246 = smul.u32 8, %s17
      %p247 = scmp.lt.s32.totalorder %s246, 31
      %s248 = scalar_select %p247, %s246, 31
      %s249 = smul.addr %s248, 2
      %s250 = smul.addr %s249, 8
      %s251 = scalar_lea.vmem %s0, %s250
      %s252 = smul.u32 8, %s17
      %s253 = smul.u32 8, %s17
      %p254 = scmp.lt.s32.totalorder %s253, 31
      %s255 = scalar_select %p254, %s253, 31
      %s256 = smul.addr %s255, 4
      %s257 = smul.addr %s256, 8
      %s258 = scalar_lea.vmem %s6, %s257
      %s259 = smul.u32 8, %s17
      %v261 = vld [vmem:[%s251] sm:$0xff]
      %v262 = vld [vmem:[%s251 + $0x8] sm:$0xff]
      %v263 = vld [vmem:[%s251 + $0x10] sm:$0xff]
      %v264 = vld [vmem:[%s251 + $0x18] sm:$0xff]
      %v265 = vld [vmem:[%s251 + $0x20] sm:$0xff]
      %v266 = vld [vmem:[%s251 + $0x28] sm:$0xff]
      %v267 = vld [vmem:[%s251 + $0x30] sm:$0xff]
      %v268 = vld [vmem:[%s251 + $0x38] sm:$0xff]
      %v269 = vld [vmem:[%s251 + $0x40] sm:$0xff]
      %v270 = vld [vmem:[%s251 + $0x48] sm:$0xff]
      %v271 = vld [vmem:[%s251 + $0x50] sm:$0xff]
      %v272 = vld [vmem:[%s251 + $0x58] sm:$0xff]
      %v273 = vld [vmem:[%s251 + $0x60] sm:$0xff]
      %v274 = vld [vmem:[%s251 + $0x68] sm:$0xff]
      %v275 = vld [vmem:[%s251 + $0x70] sm:$0xff]
      %v276 = vld [vmem:[%s251 + $0x78] sm:$0xff]
      %v277 = vld [vmem:[%s1] sm:$0x1]
      %v279 = vlaneseq
      %v280 = vshrl.u32 %v279, 7
      %v281 = vsub.s32 0, %v280
      %v282 = vrot.slane %v277, %v281
      %v284 = vmul.f32 %v261, %v282
      %v285 = vmul.f32 %v262, %v282
      %v286 = vmul.f32 %v263, %v282
      %v287 = vmul.f32 %v264, %v282
      %v288 = vmul.f32 %v265, %v282
      %v289 = vmul.f32 %v266, %v282
      %v290 = vmul.f32 %v267, %v282
      %v291 = vmul.f32 %v268, %v282
      %v292 = vmul.f32 %v269, %v282
      %v293 = vmul.f32 %v270, %v282
      %v294 = vmul.f32 %v271, %v282
      %v295 = vmul.f32 %v272, %v282
      %v296 = vmul.f32 %v273, %v282
      %v297 = vmul.f32 %v274, %v282
      %v298 = vmul.f32 %v275, %v282
      %v299 = vmul.f32 %v276, %v282
      %v300 = vld [vmem:[%s2] sm:$0x1]
      %v302 = vlaneseq
      %v303 = vshrl.u32 %v302, 7
      %v304 = vsub.s32 0, %v303
      %v305 = vrot.slane %v300, %v304
      %v307 = vadd.f32 %v284, %v305
      %v308 = vadd.f32 %v285, %v305
      %v309 = vadd.f32 %v286, %v305
      %v310 = vadd.f32 %v287, %v305
      %v311 = vadd.f32 %v288, %v305
      %v312 = vadd.f32 %v289, %v305
      %v313 = vadd.f32 %v290, %v305
      %v314 = vadd.f32 %v291, %v305
      %v315 = vadd.f32 %v292, %v305
      %v316 = vadd.f32 %v293, %v305
      %v317 = vadd.f32 %v294, %v305
      %v318 = vadd.f32 %v295, %v305
      %v319 = vadd.f32 %v296, %v305
      %v320 = vadd.f32 %v297, %v305
      %v321 = vadd.f32 %v298, %v305
      %v322 = vadd.f32 %v299, %v305
      %v323 = vmax.f32 %v307, 0.0
      %v324 = vmax.f32 %v308, 0.0
      %v325 = vmax.f32 %v309, 0.0
      %v326 = vmax.f32 %v310, 0.0
      %v327 = vmax.f32 %v311, 0.0
      %v328 = vmax.f32 %v312, 0.0
      %v329 = vmax.f32 %v313, 0.0
      %v330 = vmax.f32 %v314, 0.0
      %v331 = vmax.f32 %v315, 0.0
      %v332 = vmax.f32 %v316, 0.0
      %v333 = vmax.f32 %v317, 0.0
      %v334 = vmax.f32 %v318, 0.0
      %v335 = vmax.f32 %v319, 0.0
      %v336 = vmax.f32 %v320, 0.0
      %v337 = vmax.f32 %v321, 0.0
      %v338 = vmax.f32 %v322, 0.0
      %vm355 = vcmask 1040384
      %v356 = vrot.slane %v323, 7
      %v357 = vrot.slane %v324, 7
      %v358 = vsel %vm355, %v356, %v357
      %v359 = vrot.slane %v325, 7
      %v360 = vrot.slane %v326, 7
      %v361 = vsel %vm355, %v359, %v360
      %v362 = vrot.slane %v327, 7
      %v363 = vrot.slane %v328, 7
      %v364 = vsel %vm355, %v362, %v363
      %v365 = vrot.slane %v329, 7
      %v366 = vrot.slane %v330, 7
      %v367 = vsel %vm355, %v365, %v366
      %v368 = vrot.slane %v331, 7
      %v369 = vrot.slane %v332, 7
      %v370 = vsel %vm355, %v368, %v369
      %v371 = vrot.slane %v333, 7
      %v372 = vrot.slane %v334, 7
      %v373 = vsel %vm355, %v371, %v372
      %v374 = vrot.slane %v335, 7
      %v375 = vrot.slane %v336, 7
      %v376 = vsel %vm355, %v374, %v375
      %v377 = vrot.slane %v337, 7
      %v378 = vrot.slane %v338, 7
      %v379 = vsel %vm355, %v377, %v378
      %v404 = vsel %vm355, 0.0, %v356
      %v405 = vsel %vm355, 0.0, %v359
      %v406 = vsel %vm355, 0.0, %v362
      %v407 = vsel %vm355, 0.0, %v365
      %v408 = vsel %vm355, 0.0, %v368
      %v409 = vsel %vm355, 0.0, %v371
      %v410 = vsel %vm355, 0.0, %v374
      %v411 = vsel %vm355, 0.0, %v377
      %v412 = vsel %vm355, %v357, 0.0
      %v413 = vsel %vm355, %v360, 0.0
      %v414 = vsel %vm355, %v363, 0.0
      %v415 = vsel %vm355, %v366, 0.0
      %v416 = vsel %vm355, %v369, 0.0
      %v417 = vsel %vm355, %v372, 0.0
      %v418 = vsel %vm355, %v375, 0.0
      %v419 = vsel %vm355, %v378, 0.0
      %v420 = vpack.c.bf16 %v358, %v404
      %v421 = vpack.c.bf16 %v361, %v405
      %v422 = vpack.c.bf16 %v364, %v406
      %v423 = vpack.c.bf16 %v367, %v407
      %v424 = vpack.c.bf16 %v370, %v408
      %v425 = vpack.c.bf16 %v373, %v409
      %v426 = vpack.c.bf16 %v376, %v410
      %v427 = vpack.c.bf16 %v379, %v411
      %v428 = vld [vmem:[%s3] sm:$0xff]
      %v429 = vld [vmem:[%s3 + $0x8] sm:$0xff]
      %v430 = vld [vmem:[%s3 + $0x10] sm:$0xff]
      %v431 = vld [vmem:[%s3 + $0x18] sm:$0xff]
      %v432 = vld [vmem:[%s3 + $0x20] sm:$0xff]
      %v433 = vld [vmem:[%s3 + $0x28] sm:$0xff]
      %v434 = vld [vmem:[%s3 + $0x30] sm:$0xff]
      %v435 = vld [vmem:[%s3 + $0x38] sm:$0xff]
      %v436 = vpack.c.bf16 %v412, %v412
      %v437 = vpack.c.bf16 %v413, %v413
      %v438 = vpack.c.bf16 %v414, %v414
      %v439 = vpack.c.bf16 %v415, %v415
      %v440 = vpack.c.bf16 %v416, %v416
      %v441 = vpack.c.bf16 %v417, %v417
      %v442 = vpack.c.bf16 %v418, %v418
      %v443 = vpack.c.bf16 %v419, %v419
      %s444 = scalar_lea.vmem %s3, 64
      %v445 = vld [vmem:[%s444] sm:$0xff]
      %v446 = vld [vmem:[%s444 + $0x8] sm:$0xff]
      %v447 = vld [vmem:[%s444 + $0x10] sm:$0xff]
      %v448 = vld [vmem:[%s444 + $0x18] sm:$0xff]
      %v449 = vld [vmem:[%s444 + $0x20] sm:$0xff]
      %v450 = vld [vmem:[%s444 + $0x28] sm:$0xff]
      %v451 = vld [vmem:[%s444 + $0x30] sm:$0xff]
      %v452 = vld [vmem:[%s444 + $0x38] sm:$0xff]
      %vm453 = vsmask.f32 7424
      %v455 = vshrl.u32 %v420, 16
      %v457 = vshll.u32 %v420, 16
      %v459 = vrot.slane %v457, 1
      %v460 = vor.u32 %v455, %v459
      %v462 = vshll.u32 %v436, 16
      %v464 = vrot.slane %v462, 1
      %v465 = vsel %vm453, %v460, %v464
      %v467 = vshrl.u32 %v421, 16
      %v469 = vshll.u32 %v421, 16
      %v471 = vrot.slane %v469, 1
      %v472 = vor.u32 %v467, %v471
      %v474 = vshll.u32 %v437, 16
      %v476 = vrot.slane %v474, 1
      %v477 = vsel %vm453, %v472, %v476
      %v479 = vshrl.u32 %v422, 16
      %v481 = vshll.u32 %v422, 16
      %v483 = vrot.slane %v481, 1
      %v484 = vor.u32 %v479, %v483
      %v486 = vshll.u32 %v438, 16
      %v488 = vrot.slane %v486, 1
      %v489 = vsel %vm453, %v484, %v488
      %v491 = vshrl.u32 %v423, 16
      %v493 = vshll.u32 %v423, 16
      %v495 = vrot.slane %v493, 1
      %v496 = vor.u32 %v491, %v495
      %v498 = vshll.u32 %v439, 16
      %v500 = vrot.slane %v498, 1
      %v501 = vsel %vm453, %v496, %v500
      %v503 = vshrl.u32 %v424, 16
      %v505 = vshll.u32 %v424, 16
      %v507 = vrot.slane %v505, 1
      %v508 = vor.u32 %v503, %v507
      %v510 = vshll.u32 %v440, 16
      %v512 = vrot.slane %v510, 1
      %v513 = vsel %vm453, %v508, %v512
      %v515 = vshrl.u32 %v425, 16
      %v517 = vshll.u32 %v425, 16
      %v519 = vrot.slane %v517, 1
      %v520 = vor.u32 %v515, %v519
      %v522 = vshll.u32 %v441, 16
      %v524 = vrot.slane %v522, 1
      %v525 = vsel %vm453, %v520, %v524
      %v527 = vshrl.u32 %v426, 16
      %v529 = vshll.u32 %v426, 16
      %v531 = vrot.slane %v529, 1
      %v532 = vor.u32 %v527, %v531
      %v534 = vshll.u32 %v442, 16
      %v536 = vrot.slane %v534, 1
      %v537 = vsel %vm453, %v532, %v536
      %v539 = vshrl.u32 %v427, 16
      %v541 = vshll.u32 %v427, 16
      %v543 = vrot.slane %v541, 1
      %v544 = vor.u32 %v539, %v543
      %v546 = vshll.u32 %v443, 16
      %v548 = vrot.slane %v546, 1
      %v549 = vsel %vm453, %v544, %v548
      %v558 = vunpack.c.l.b16 %v445
      %v559 = vunpack.c.h.b16 %v445
      %v560 = vunpack.c.l.b16 %v446
      %v561 = vunpack.c.h.b16 %v446
      %v562 = vunpack.c.l.b16 %v447
      %v563 = vunpack.c.h.b16 %v447
      %v564 = vunpack.c.l.b16 %v448
      %v565 = vunpack.c.h.b16 %v448
      %v566 = vunpack.c.l.b16 %v449
      %v567 = vunpack.c.h.b16 %v449
      %v568 = vunpack.c.l.b16 %v450
      %v569 = vunpack.c.h.b16 %v450
      %v570 = vunpack.c.l.b16 %v451
      %v571 = vunpack.c.h.b16 %v451
      %v572 = vunpack.c.l.b16 %v452
      %v573 = vunpack.c.h.b16 %v452
      %v574 = vpack.c.b16 %v560, %v558
      %v575 = vpack.c.b16 %v561, %v559
      %v576 = vpack.c.b16 %v564, %v562
      %v577 = vpack.c.b16 %v565, %v563
      %v578 = vpack.c.b16 %v568, %v566
      %v579 = vpack.c.b16 %v569, %v567
      %v580 = vpack.c.b16 %v572, %v570
      %v581 = vpack.c.b16 %v573, %v571
      %vm590 = vcmask 523264
      %v592 = vsel %vm590, %v465, 0
      %v595 = vsel %vm590, %v477, 0
      %v598 = vsel %vm590, %v489, 0
      %v601 = vsel %vm590, %v501, 0
      %v604 = vsel %vm590, %v513, 0
      %v607 = vsel %vm590, %v525, 0
      %v610 = vsel %vm590, %v537, 0
      %v613 = vsel %vm590, %v549, 0
      %615 = vmatprep.subr.bf16.mxu0 %v575
      %616 = vmatpush1.bf16.msra.mxu0 %v574
      %617 = vmatprep.subr.bf16.mxu0 %v577
      %618 = vmatpush1.bf16.msra.mxu0 %v576
      %619 = vmatprep.subr.bf16.mxu0 %v579
      %620 = vmatpush1.bf16.msra.mxu0 %v578
      %621 = vmatprep.subr.bf16.mxu0 %v581
      %622 = vmatpush1.bf16.msra.mxu0 %v580
      %623 = vmatprep.subr.bf16.mxu0 0
      %624 = vmatpush1.bf16.msra.mxu0 0
      %625 = vmatprep.subr.bf16.mxu0 0
      %626 = vmatpush1.bf16.msra.mxu0 0
      %627 = vmatprep.subr.bf16.mxu0 0
      %628 = vmatpush1.bf16.msra.mxu0 0
      %629 = vmatprep.subr.bf16.mxu0 0
      %630 = vmatpush1.bf16.msra.mxu0 0
      %631 = vmatprep.subr.bf16.mxu0 0
      %632 = vmatpush1.bf16.msra.mxu0 0
      %633 = vmatprep.subr.bf16.mxu0 0
      %634 = vmatpush1.bf16.msra.mxu0 0
      %635 = vmatprep.subr.bf16.mxu0 0
      %636 = vmatpush1.bf16.msra.mxu0 0
      %637 = vmatprep.subr.bf16.mxu0 0
      %638 = vmatpush1.bf16.msra.mxu0 0
      %639 = vmatprep.subr.bf16.mxu0 0
      %640 = vmatpush1.bf16.msra.mxu0 0
      %641 = vmatprep.subr.bf16.mxu0 0
      %642 = vmatpush1.bf16.msra.mxu0 0
      %643 = vmatprep.subr.bf16.mxu0 0
      %644 = vmatpush1.bf16.msra.mxu0 0
      %645 = vmatprep.subr.bf16.mxu0 0
      %646 = vmatpush1.bf16.msra.mxu0 0
      %647 = vmatprep.mubr.bf16.mxu0 0
      %648 = vmatmul.mubr.bf16.gmra.mrb[0].mxu0 %v592
      %v649 = vpop.f32.mrb[0].mxu0
      %v650 = vadd.f32 0.0, %v649
      %v651 = vpop.f32.mrb[0].mxu0
      %v652 = vadd.f32 0.0, %v651
      %v653 = vpop.f32.mrb[0].mxu0
      %v654 = vadd.f32 0.0, %v653
      %v655 = vpop.f32.mrb[0].mxu0
      %v656 = vadd.f32 0.0, %v655
      %657 = vmatprep.mubr.bf16.mxu0 0
      %658 = vmatmul.mubr.bf16.gmra.mrb[0].mxu0 %v595
      %v659 = vpop.f32.mrb[0].mxu0
      %v660 = vadd.f32 0.0, %v659
      %v661 = vpop.f32.mrb[0].mxu0
      %v662 = vadd.f32 0.0, %v661
      %v663 = vpop.f32.mrb[0].mxu0
      %v664 = vadd.f32 0.0, %v663
      %v665 = vpop.f32.mrb[0].mxu0
      %v666 = vadd.f32 0.0, %v665
      %667 = vmatprep.mubr.bf16.mxu0 0
      %668 = vmatmul.mubr.bf16.gmra.mrb[0].mxu0 %v598
      %v669 = vpop.f32.mrb[0].mxu0
      %v670 = vadd.f32 0.0, %v669
      %v671 = vpop.f32.mrb[0].mxu0
      %v672 = vadd.f32 0.0, %v671
      %v673 = vpop.f32.mrb[0].mxu0
      %v674 = vadd.f32 0.0, %v673
      %v675 = vpop.f32.mrb[0].mxu0
      %v676 = vadd.f32 0.0, %v675
      %677 = vmatprep.mubr.bf16.mxu0 0
      %678 = vmatmul.mubr.bf16.gmra.mrb[0].mxu0 %v601
      %v679 = vpop.f32.mrb[0].mxu0
      %v680 = vadd.f32 0.0, %v679
      %v681 = vpop.f32.mrb[0].mxu0
      %v682 = vadd.f32 0.0, %v681
      %v683 = vpop.f32.mrb[0].mxu0
      %v684 = vadd.f32 0.0, %v683
      %v685 = vpop.f32.mrb[0].mxu0
      %v686 = vadd.f32 0.0, %v685
      %687 = vmatprep.mubr.bf16.mxu0 0
      %688 = vmatmul.mubr.bf16.gmra.mrb[0].mxu0 %v604
      %v689 = vpop.f32.mrb[0].mxu0
      %v690 = vadd.f32 0.0, %v689
      %v691 = vpop.f32.mrb[0].mxu0
      %v692 = vadd.f32 0.0, %v691
      %v693 = vpop.f32.mrb[0].mxu0
      %v694 = vadd.f32 0.0, %v693
      %v695 = vpop.f32.mrb[0].mxu0
      %v696 = vadd.f32 0.0, %v695
      %697 = vmatprep.mubr.bf16.mxu0 0
      %698 = vmatmul.mubr.bf16.gmra.mrb[0].mxu0 %v607
      %v699 = vpop.f32.mrb[0].mxu0
      %v700 = vadd.f32 0.0, %v699
      %v701 = vpop.f32.mrb[0].mxu0
      %v702 = vadd.f32 0.0, %v701
      %v703 = vpop.f32.mrb[0].mxu0
      %v704 = vadd.f32 0.0, %v703
      %v705 = vpop.f32.mrb[0].mxu0
      %v706 = vadd.f32 0.0, %v705
      %707 = vmatprep.mubr.bf16.mxu0 0
      %708 = vmatmul.mubr.bf16.gmra.mrb[0].mxu0 %v610
      %v709 = vpop.f32.mrb[0].mxu0
      %v710 = vadd.f32 0.0, %v709
      %v711 = vpop.f32.mrb[0].mxu0
      %v712 = vadd.f32 0.0, %v711
      %v713 = vpop.f32.mrb[0].mxu0
      %v714 = vadd.f32 0.0, %v713
      %v715 = vpop.f32.mrb[0].mxu0
      %v716 = vadd.f32 0.0, %v715
      %717 = vmatprep.mubr.bf16.mxu0 0
      %718 = vmatmul.mubr.bf16.gmra.mrb[0].mxu0 %v613
      %v719 = vpop.f32.mrb[0].mxu0
      %v720 = vadd.f32 0.0, %v719
      %v721 = vpop.f32.mrb[0].mxu0
      %v722 = vadd.f32 0.0, %v721
      %v723 = vpop.f32.mrb[0].mxu0
      %v724 = vadd.f32 0.0, %v723
      %v725 = vpop.f32.mrb[0].mxu0
      %v726 = vadd.f32 0.0, %v725
      %727 = vdwg.mxu0
      %v736 = vunpack.c.l.b16 %v428
      %v737 = vunpack.c.h.b16 %v428
      %v738 = vunpack.c.l.b16 %v429
      %v739 = vunpack.c.h.b16 %v429
      %v740 = vunpack.c.l.b16 %v430
      %v741 = vunpack.c.h.b16 %v430
      %v742 = vunpack.c.l.b16 %v431
      %v743 = vunpack.c.h.b16 %v431
      %v744 = vunpack.c.l.b16 %v432
      %v745 = vunpack.c.h.b16 %v432
      %v746 = vunpack.c.l.b16 %v433
      %v747 = vunpack.c.h.b16 %v433
      %v748 = vunpack.c.l.b16 %v434
      %v749 = vunpack.c.h.b16 %v434
      %v750 = vunpack.c.l.b16 %v435
      %v751 = vunpack.c.h.b16 %v435
      %v752 = vpack.c.b16 %v738, %v736
      %v753 = vpack.c.b16 %v739, %v737
      %v754 = vpack.c.b16 %v742, %v740
      %v755 = vpack.c.b16 %v743, %v741
      %v756 = vpack.c.b16 %v746, %v744
      %v757 = vpack.c.b16 %v747, %v745
      %v758 = vpack.c.b16 %v750, %v748
      %v759 = vpack.c.b16 %v751, %v749
      %v768 = vsel %vm590, %v420, 0
      %v770 = vsel %vm590, %v421, 0
      %v772 = vsel %vm590, %v422, 0
      %v774 = vsel %vm590, %v423, 0
      %v776 = vsel %vm590, %v424, 0
      %v778 = vsel %vm590, %v425, 0
      %v780 = vsel %vm590, %v426, 0
      %v782 = vsel %vm590, %v427, 0
      %784 = vmatprep.subr.bf16.mxu0 %v753
      %785 = vmatpush1.bf16.msra.mxu0 %v752
      %786 = vmatprep.subr.bf16.mxu0 %v755
      %787 = vmatpush1.bf16.msra.mxu0 %v754
      %788 = vmatprep.subr.bf16.mxu0 %v757
      %789 = vmatpush1.bf16.msra.mxu0 %v756
      %790 = vmatprep.subr.bf16.mxu0 %v759
      %791 = vmatpush1.bf16.msra.mxu0 %v758
      %792 = vmatprep.subr.bf16.mxu0 0
      %793 = vmatpush1.bf16.msra.mxu0 0
      %794 = vmatprep.subr.bf16.mxu0 0
      %795 = vmatpush1.bf16.msra.mxu0 0
      %796 = vmatprep.subr.bf16.mxu0 0
      %797 = vmatpush1.bf16.msra.mxu0 0
      %798 = vmatprep.subr.bf16.mxu0 0
      %799 = vmatpush1.bf16.msra.mxu0 0
      %800 = vmatprep.subr.bf16.mxu0 0
      %801 = vmatpush1.bf16.msra.mxu0 0
      %802 = vmatprep.subr.bf16.mxu0 0
      %803 = vmatpush1.bf16.msra.mxu0 0
      %804 = vmatprep.subr.bf16.mxu0 0
      %805 = vmatpush1.bf16.msra.mxu0 0
      %806 = vmatprep.subr.bf16.mxu0 0
      %807 = vmatpush1.bf16.msra.mxu0 0
      %808 = vmatprep.subr.bf16.mxu0 0
      %809 = vmatpush1.bf16.msra.mxu0 0
      %810 = vmatprep.subr.bf16.mxu0 0
      %811 = vmatpush1.bf16.msra.mxu0 0
      %812 = vmatprep.subr.bf16.mxu0 0
      %813 = vmatpush1.bf16.msra.mxu0 0
      %814 = vmatprep.subr.bf16.mxu0 0
      %815 = vmatpush1.bf16.msra.mxu0 0
      %816 = vmatprep.mubr.bf16.mxu0 0
      %817 = vmatmul.mubr.bf16.gmra.mrb[0].mxu0 %v768
      %v818 = vpop.f32.mrb[0].mxu0
      %v819 = vadd.f32 %v650, %v818
      %v820 = vpop.f32.mrb[0].mxu0
      %v821 = vadd.f32 %v652, %v820
      %v822 = vpop.f32.mrb[0].mxu0
      %v823 = vadd.f32 %v654, %v822
      %v824 = vpop.f32.mrb[0].mxu0
      %v825 = vadd.f32 %v656, %v824
      %826 = vmatprep.mubr.bf16.mxu0 0
      %827 = vmatmul.mubr.bf16.gmra.mrb[0].mxu0 %v770
      %v828 = vpop.f32.mrb[0].mxu0
      %v829 = vadd.f32 %v660, %v828
      %v830 = vpop.f32.mrb[0].mxu0
      %v831 = vadd.f32 %v662, %v830
      %v832 = vpop.f32.mrb[0].mxu0
      %v833 = vadd.f32 %v664, %v832
      %v834 = vpop.f32.mrb[0].mxu0
      %v835 = vadd.f32 %v666, %v834
      %836 = vmatprep.mubr.bf16.mxu0 0
      %837 = vmatmul.mubr.bf16.gmra.mrb[0].mxu0 %v772
      %v838 = vpop.f32.mrb[0].mxu0
      %v839 = vadd.f32 %v670, %v838
      %v840 = vpop.f32.mrb[0].mxu0
      %v841 = vadd.f32 %v672, %v840
      %v842 = vpop.f32.mrb[0].mxu0
      %v843 = vadd.f32 %v674, %v842
      %v844 = vpop.f32.mrb[0].mxu0
      %v845 = vadd.f32 %v676, %v844
      %846 = vmatprep.mubr.bf16.mxu0 0
      %847 = vmatmul.mubr.bf16.gmra.mrb[0].mxu0 %v774
      %v848 = vpop.f32.mrb[0].mxu0
      %v849 = vadd.f32 %v680, %v848
      %v850 = vpop.f32.mrb[0].mxu0
      %v851 = vadd.f32 %v682, %v850
      %v852 = vpop.f32.mrb[0].mxu0
      %v853 = vadd.f32 %v684, %v852
      %v854 = vpop.f32.mrb[0].mxu0
      %v855 = vadd.f32 %v686, %v854
      %856 = vmatprep.mubr.bf16.mxu0 0
      %857 = vmatmul.mubr.bf16.gmra.mrb[0].mxu0 %v776
      %v858 = vpop.f32.mrb[0].mxu0
      %v859 = vadd.f32 %v690, %v858
      %v860 = vpop.f32.mrb[0].mxu0
      %v861 = vadd.f32 %v692, %v860
      %v862 = vpop.f32.mrb[0].mxu0
      %v863 = vadd.f32 %v694, %v862
      %v864 = vpop.f32.mrb[0].mxu0
      %v865 = vadd.f32 %v696, %v864
      %866 = vmatprep.mubr.bf16.mxu0 0
      %867 = vmatmul.mubr.bf16.gmra.mrb[0].mxu0 %v778
      %v868 = vpop.f32.mrb[0].mxu0
      %v869 = vadd.f32 %v700, %v868
      %v870 = vpop.f32.mrb[0].mxu0
      %v871 = vadd.f32 %v702, %v870
      %v872 = vpop.f32.mrb[0].mxu0
      %v873 = vadd.f32 %v704, %v872
      %v874 = vpop.f32.mrb[0].mxu0
      %v875 = vadd.f32 %v706, %v874
      %876 = vmatprep.mubr.bf16.mxu0 0
      %877 = vmatmul.mubr.bf16.gmra.mrb[0].mxu0 %v780
      %v878 = vpop.f32.mrb[0].mxu0
      %v879 = vadd.f32 %v710, %v878
      %v880 = vpop.f32.mrb[0].mxu0
      %v881 = vadd.f32 %v712, %v880
      %v882 = vpop.f32.mrb[0].mxu0
      %v883 = vadd.f32 %v714, %v882
      %v884 = vpop.f32.mrb[0].mxu0
      %v885 = vadd.f32 %v716, %v884
      %886 = vmatprep.mubr.bf16.mxu0 0
      %887 = vmatmul.mubr.bf16.gmra.mrb[0].mxu0 %v782
      %v888 = vpop.f32.mrb[0].mxu0
      %v889 = vadd.f32 %v720, %v888
      %v890 = vpop.f32.mrb[0].mxu0
      %v891 = vadd.f32 %v722, %v890
      %v892 = vpop.f32.mrb[0].mxu0
      %v893 = vadd.f32 %v724, %v892
      %v894 = vpop.f32.mrb[0].mxu0
      %v895 = vadd.f32 %v726, %v894
      %896 = vdwg.mxu0
      %s897 = scalar_lea.vmem %s3, 128
      %v898 = vld [vmem:[%s897] sm:$0xff]
      %v899 = vld [vmem:[%s897 + $0x8] sm:$0xff]
      %v900 = vld [vmem:[%s897 + $0x10] sm:$0xff]
      %v901 = vld [vmem:[%s897 + $0x18] sm:$0xff]
      %v902 = vld [vmem:[%s897 + $0x20] sm:$0xff]
      %v903 = vld [vmem:[%s897 + $0x28] sm:$0xff]
      %v904 = vld [vmem:[%s897 + $0x30] sm:$0xff]
      %v905 = vld [vmem:[%s897 + $0x38] sm:$0xff]
      %vm922 = vcmask 1046528
      %v923 = vrot.slane %v420, 1
      %v924 = vrot.slane %v436, 1
      %v925 = vsel %vm922, %v923, %v924
      %v926 = vrot.slane %v421, 1
      %v927 = vrot.slane %v437, 1
      %v928 = vsel %vm922, %v926, %v927
      %v929 = vrot.slane %v422, 1
      %v930 = vrot.slane %v438, 1
      %v931 = vsel %vm922, %v929, %v930
      %v932 = vrot.slane %v423, 1
      %v933 = vrot.slane %v439, 1
      %v934 = vsel %vm922, %v932, %v933
      %v935 = vrot.slane %v424, 1
      %v936 = vrot.slane %v440, 1
      %v937 = vsel %vm922, %v935, %v936
      %v938 = vrot.slane %v425, 1
      %v939 = vrot.slane %v441, 1
      %v940 = vsel %vm922, %v938, %v939
      %v941 = vrot.slane %v426, 1
      %v942 = vrot.slane %v442, 1
      %v943 = vsel %vm922, %v941, %v942
      %v944 = vrot.slane %v427, 1
      %v945 = vrot.slane %v443, 1
      %v946 = vsel %vm922, %v944, %v945
      %v955 = vunpack.c.l.b16 %v898
      %v956 = vunpack.c.h.b16 %v898
      %v957 = vunpack.c.l.b16 %v899
      %v958 = vunpack.c.h.b16 %v899
      %v959 = vunpack.c.l.b16 %v900
      %v960 = vunpack.c.h.b16 %v900
      %v961 = vunpack.c.l.b16 %v901
      %v962 = vunpack.c.h.b16 %v901
      %v963 = vunpack.c.l.b16 %v902
      %v964 = vunpack.c.h.b16 %v902
      %v965 = vunpack.c.l.b16 %v903
      %v966 = vunpack.c.h.b16 %v903
      %v967 = vunpack.c.l.b16 %v904
      %v968 = vunpack.c.h.b16 %v904
      %v969 = vunpack.c.l.b16 %v905
      %v970 = vunpack.c.h.b16 %v905
      %v971 = vpack.c.b16 %v957, %v955
      %v972 = vpack.c.b16 %v958, %v956
      %v973 = vpack.c.b16 %v961, %v959
      %v974 = vpack.c.b16 %v962, %v960
      %v975 = vpack.c.b16 %v965, %v963
      %v976 = vpack.c.b16 %v966, %v964
      %v977 = vpack.c.b16 %v969, %v967
      %v978 = vpack.c.b16 %v970, %v968
      %v988 = vsel %vm590, %v925, 0
      %v991 = vsel %vm590, %v928, 0
      %v994 = vsel %vm590, %v931, 0
      %v997 = vsel %vm590, %v934, 0
      %v1000 = vsel %vm590, %v937, 0
      %v1003 = vsel %vm590, %v940, 0
      %v1006 = vsel %vm590, %v943, 0
      %v1009 = vsel %vm590, %v946, 0
      %1011 = vmatprep.subr.bf16.mxu0 %v972
      %1012 = vmatpush1.bf16.msra.mxu0 %v971
      %1013 = vmatprep.subr.bf16.mxu0 %v974
      %1014 = vmatpush1.bf16.msra.mxu0 %v973
      %1015 = vmatprep.subr.bf16.mxu0 %v976
      %1016 = vmatpush1.bf16.msra.mxu0 %v975
      %1017 = vmatprep.subr.bf16.mxu0 %v978
      %1018 = vmatpush1.bf16.msra.mxu0 %v977
      %1019 = vmatprep.subr.bf16.mxu0 0
      %1020 = vmatpush1.bf16.msra.mxu0 0
      %1021 = vmatprep.subr.bf16.mxu0 0
      %1022 = vmatpush1.bf16.msra.mxu0 0
      %1023 = vmatprep.subr.bf16.mxu0 0
      %1024 = vmatpush1.bf16.msra.mxu0 0
      %1025 = vmatprep.subr.bf16.mxu0 0
      %1026 = vmatpush1.bf16.msra.mxu0 0
      %1027 = vmatprep.subr.bf16.mxu0 0
      %1028 = vmatpush1.bf16.msra.mxu0 0
      %1029 = vmatprep.subr.bf16.mxu0 0
      %1030 = vmatpush1.bf16.msra.mxu0 0
      %1031 = vmatprep.subr.bf16.mxu0 0
      %1032 = vmatpush1.bf16.msra.mxu0 0
      %1033 = vmatprep.subr.bf16.mxu0 0
      %1034 = vmatpush1.bf16.msra.mxu0 0
      %1035 = vmatprep.subr.bf16.mxu0 0
      %1036 = vmatpush1.bf16.msra.mxu0 0
      %1037 = vmatprep.subr.bf16.mxu0 0
      %1038 = vmatpush1.bf16.msra.mxu0 0
      %1039 = vmatprep.subr.bf16.mxu0 0
      %1040 = vmatpush1.bf16.msra.mxu0 0
      %1041 = vmatprep.subr.bf16.mxu0 0
      %1042 = vmatpush1.bf16.msra.mxu0 0
      %1043 = vmatprep.mubr.bf16.mxu0 0
      %1044 = vmatmul.mubr.bf16.gmra.mrb[0].mxu0 %v988
      %v1045 = vpop.f32.mrb[0].mxu0
      %v1046 = vadd.f32 0.0, %v1045
      %v1047 = vpop.f32.mrb[0].mxu0
      %v1048 = vadd.f32 0.0, %v1047
      %v1049 = vpop.f32.mrb[0].mxu0
      %v1050 = vadd.f32 0.0, %v1049
      %v1051 = vpop.f32.mrb[0].mxu0
      %v1052 = vadd.f32 0.0, %v1051
      %1053 = vmatprep.mubr.bf16.mxu0 0
      %1054 = vmatmul.mubr.bf16.gmra.mrb[0].mxu0 %v991
      %v1055 = vpop.f32.mrb[0].mxu0
      %v1056 = vadd.f32 0.0, %v1055
      %v1057 = vpop.f32.mrb[0].mxu0
      %v1058 = vadd.f32 0.0, %v1057
      %v1059 = vpop.f32.mrb[0].mxu0
      %v1060 = vadd.f32 0.0, %v1059
      %v1061 = vpop.f32.mrb[0].mxu0
      %v1062 = vadd.f32 0.0, %v1061
      %1063 = vmatprep.mubr.bf16.mxu0 0
      %1064 = vmatmul.mubr.bf16.gmra.mrb[0].mxu0 %v994
      %v1065 = vpop.f32.mrb[0].mxu0
      %v1066 = vadd.f32 0.0, %v1065
      %v1067 = vpop.f32.mrb[0].mxu0
      %v1068 = vadd.f32 0.0, %v1067
      %v1069 = vpop.f32.mrb[0].mxu0
      %v1070 = vadd.f32 0.0, %v1069
      %v1071 = vpop.f32.mrb[0].mxu0
      %v1072 = vadd.f32 0.0, %v1071
      %1073 = vmatprep.mubr.bf16.mxu0 0
      %1074 = vmatmul.mubr.bf16.gmra.mrb[0].mxu0 %v997
      %v1075 = vpop.f32.mrb[0].mxu0
      %v1076 = vadd.f32 0.0, %v1075
      %v1077 = vpop.f32.mrb[0].mxu0
      %v1078 = vadd.f32 0.0, %v1077
      %v1079 = vpop.f32.mrb[0].mxu0
      %v1080 = vadd.f32 0.0, %v1079
      %v1081 = vpop.f32.mrb[0].mxu0
      %v1082 = vadd.f32 0.0, %v1081
      %1083 = vmatprep.mubr.bf16.mxu0 0
      %1084 = vmatmul.mubr.bf16.gmra.mrb[0].mxu0 %v1000
      %v1085 = vpop.f32.mrb[0].mxu0
      %v1086 = vadd.f32 0.0, %v1085
      %v1087 = vpop.f32.mrb[0].mxu0
      %v1088 = vadd.f32 0.0, %v1087
      %v1089 = vpop.f32.mrb[0].mxu0
      %v1090 = vadd.f32 0.0, %v1089
      %v1091 = vpop.f32.mrb[0].mxu0
      %v1092 = vadd.f32 0.0, %v1091
      %1093 = vmatprep.mubr.bf16.mxu0 0
      %1094 = vmatmul.mubr.bf16.gmra.mrb[0].mxu0 %v1003
      %v1095 = vpop.f32.mrb[0].mxu0
      %v1096 = vadd.f32 0.0, %v1095
      %v1097 = vpop.f32.mrb[0].mxu0
      %v1098 = vadd.f32 0.0, %v1097
      %v1099 = vpop.f32.mrb[0].mxu0
      %v1100 = vadd.f32 0.0, %v1099
      %v1101 = vpop.f32.mrb[0].mxu0
      %v1102 = vadd.f32 0.0, %v1101
      %1103 = vmatprep.mubr.bf16.mxu0 0
      %1104 = vmatmul.mubr.bf16.gmra.mrb[0].mxu0 %v1006
      %v1105 = vpop.f32.mrb[0].mxu0
      %v1106 = vadd.f32 0.0, %v1105
      %v1107 = vpop.f32.mrb[0].mxu0
      %v1108 = vadd.f32 0.0, %v1107
      %v1109 = vpop.f32.mrb[0].mxu0
      %v1110 = vadd.f32 0.0, %v1109
      %v1111 = vpop.f32.mrb[0].mxu0
      %v1112 = vadd.f32 0.0, %v1111
      %1113 = vmatprep.mubr.bf16.mxu0 0
      %1114 = vmatmul.mubr.bf16.gmra.mrb[0].mxu0 %v1009
      %v1115 = vpop.f32.mrb[0].mxu0
      %v1116 = vadd.f32 0.0, %v1115
      %v1117 = vpop.f32.mrb[0].mxu0
      %v1118 = vadd.f32 0.0, %v1117
      %v1119 = vpop.f32.mrb[0].mxu0
      %v1120 = vadd.f32 0.0, %v1119
      %v1121 = vpop.f32.mrb[0].mxu0
      %v1122 = vadd.f32 0.0, %v1121
      %1123 = vdwg.mxu0
      %v1124 = vadd.f32 %v819, %v1046
      %v1125 = vadd.f32 %v821, %v1048
      %v1126 = vadd.f32 %v823, %v1050
      %v1127 = vadd.f32 %v825, %v1052
      %v1128 = vadd.f32 %v829, %v1056
      %v1129 = vadd.f32 %v831, %v1058
      %v1130 = vadd.f32 %v833, %v1060
      %v1131 = vadd.f32 %v835, %v1062
      %v1132 = vadd.f32 %v839, %v1066
      %v1133 = vadd.f32 %v841, %v1068
      %v1134 = vadd.f32 %v843, %v1070
      %v1135 = vadd.f32 %v845, %v1072
      %v1136 = vadd.f32 %v849, %v1076
      %v1137 = vadd.f32 %v851, %v1078
      %v1138 = vadd.f32 %v853, %v1080
      %v1139 = vadd.f32 %v855, %v1082
      %v1140 = vadd.f32 %v859, %v1086
      %v1141 = vadd.f32 %v861, %v1088
      %v1142 = vadd.f32 %v863, %v1090
      %v1143 = vadd.f32 %v865, %v1092
      %v1144 = vadd.f32 %v869, %v1096
      %v1145 = vadd.f32 %v871, %v1098
      %v1146 = vadd.f32 %v873, %v1100
      %v1147 = vadd.f32 %v875, %v1102
      %v1148 = vadd.f32 %v879, %v1106
      %v1149 = vadd.f32 %v881, %v1108
      %v1150 = vadd.f32 %v883, %v1110
      %v1151 = vadd.f32 %v885, %v1112
      %v1152 = vadd.f32 %v889, %v1116
      %v1153 = vadd.f32 %v891, %v1118
      %v1154 = vadd.f32 %v893, %v1120
      %v1155 = vadd.f32 %v895, %v1122
      %v1156 = vld [vmem:[%s4] sm:$0xff]
      %v1157 = vld [vmem:[%s4 + $0x8] sm:$0xff]
      %v1158 = vld [vmem:[%s4 + $0x10] sm:$0xff]
      %v1159 = vld [vmem:[%s4 + $0x18] sm:$0xff]
      %v1160 = vld [vmem:[%s4 + $0x20] sm:$0xff]
      %v1161 = vld [vmem:[%s4 + $0x28] sm:$0xff]
      %v1162 = vld [vmem:[%s4 + $0x30] sm:$0xff]
      %v1163 = vld [vmem:[%s4 + $0x38] sm:$0xff]
      %v1164 = vld [vmem:[%s4 + $0x40] sm:$0xff]
      %v1165 = vld [vmem:[%s4 + $0x48] sm:$0xff]
      %v1166 = vld [vmem:[%s4 + $0x50] sm:$0xff]
      %v1167 = vld [vmem:[%s4 + $0x58] sm:$0xff]
      %v1168 = vld [vmem:[%s4 + $0x60] sm:$0xff]
      %v1169 = vld [vmem:[%s4 + $0x68] sm:$0xff]
      %v1170 = vld [vmem:[%s4 + $0x70] sm:$0xff]
      %v1171 = vld [vmem:[%s4 + $0x78] sm:$0xff]
      %v1173 = vsel %vm590, %v261, 0
      %v1176 = vsel %vm590, %v262, 0
      %v1179 = vsel %vm590, %v263, 0
      %v1182 = vsel %vm590, %v264, 0
      %v1185 = vsel %vm590, %v265, 0
      %v1188 = vsel %vm590, %v266, 0
      %v1191 = vsel %vm590, %v267, 0
      %v1194 = vsel %vm590, %v268, 0
      %v1197 = vsel %vm590, %v269, 0
      %v1200 = vsel %vm590, %v270, 0
      %v1203 = vsel %vm590, %v271, 0
      %v1206 = vsel %vm590, %v272, 0
      %v1209 = vsel %vm590, %v273, 0
      %v1212 = vsel %vm590, %v274, 0
      %v1215 = vsel %vm590, %v275, 0
      %v1218 = vsel %vm590, %v276, 0
      %v1220 = vand.u32 %v1157, 4294901760
      %1221 = vmatprep.subr.mxu0 %v1220
      %v1222 = vand.u32 %v1156, 4294901760
      %1223 = vmatpush1.msra.mxu0 %v1222
      %v1224 = vand.u32 %v1159, 4294901760
      %1225 = vmatprep.subr.mxu0 %v1224
      %v1226 = vand.u32 %v1158, 4294901760
      %1227 = vmatpush1.msra.mxu0 %v1226
      %v1228 = vand.u32 %v1161, 4294901760
      %1229 = vmatprep.subr.mxu0 %v1228
      %v1230 = vand.u32 %v1160, 4294901760
      %1231 = vmatpush1.msra.mxu0 %v1230
      %v1232 = vand.u32 %v1163, 4294901760
      %1233 = vmatprep.subr.mxu0 %v1232
      %v1234 = vand.u32 %v1162, 4294901760
      %1235 = vmatpush1.msra.mxu0 %v1234
      %v1236 = vand.u32 %v1165, 4294901760
      %1237 = vmatprep.subr.mxu0 %v1236
      %v1238 = vand.u32 %v1164, 4294901760
      %1239 = vmatpush1.msra.mxu0 %v1238
      %v1240 = vand.u32 %v1167, 4294901760
      %1241 = vmatprep.subr.mxu0 %v1240
      %v1242 = vand.u32 %v1166, 4294901760
      %1243 = vmatpush1.msra.mxu0 %v1242
      %v1244 = vand.u32 %v1169, 4294901760
      %1245 = vmatprep.subr.mxu0 %v1244
      %v1246 = vand.u32 %v1168, 4294901760
      %1247 = vmatpush1.msra.mxu0 %v1246
      %v1248 = vand.u32 %v1171, 4294901760
      %1249 = vmatprep.subr.mxu0 %v1248
      %v1250 = vand.u32 %v1170, 4294901760
      %1251 = vmatpush1.msra.mxu0 %v1250
      %1252 = vmatprep.subr.mxu0 0.0
      %1253 = vmatpush1.msra.mxu0 0.0
      %1254 = vmatprep.subr.mxu0 0.0
      %1255 = vmatpush1.msra.mxu0 0.0
      %1256 = vmatprep.subr.mxu0 0.0
      %1257 = vmatpush1.msra.mxu0 0.0
      %1258 = vmatprep.subr.mxu0 0.0
      %1259 = vmatpush1.msra.mxu0 0.0
      %1260 = vmatprep.subr.mxu0 0.0
      %1261 = vmatpush1.msra.mxu0 0.0
      %1262 = vmatprep.subr.mxu0 0.0
      %1263 = vmatpush1.msra.mxu0 0.0
      %1264 = vmatprep.subr.mxu0 0.0
      %1265 = vmatpush1.msra.mxu0 0.0
      %1266 = vmatprep.subr.mxu0 0.0
      %1267 = vmatpush1.msra.mxu0 0.0
      %1268 = vmatprep.subr.mxu0 0.0
      %1269 = vmatpush1.msra.mxu0 0.0
      %1270 = vmatprep.subr.mxu0 0.0
      %1271 = vmatpush1.msra.mxu0 0.0
      %1272 = vmatprep.subr.mxu0 0.0
      %1273 = vmatpush1.msra.mxu0 0.0
      %1274 = vmatprep.subr.mxu0 0.0
      %1275 = vmatpush1.msra.mxu0 0.0
      %1276 = vmatprep.subr.mxu0 0.0
      %1277 = vmatpush1.msra.mxu0 0.0
      %1278 = vmatprep.subr.mxu0 0.0
      %1279 = vmatpush1.msra.mxu0 0.0
      %1280 = vmatprep.subr.mxu0 0.0
      %1281 = vmatpush1.msra.mxu0 0.0
      %1282 = vmatprep.subr.mxu0 0.0
      %1283 = vmatpush1.msra.mxu0 0.0
      %1284 = vmatprep.subr.mxu0 0.0
      %1285 = vmatpush1.msra.mxu0 0.0
      %1286 = vmatprep.subr.mxu0 0.0
      %1287 = vmatpush1.msra.mxu0 0.0
      %1288 = vmatprep.subr.mxu0 0.0
      %1289 = vmatpush1.msra.mxu0 0.0
      %1290 = vmatprep.subr.mxu0 0.0
      %1291 = vmatpush1.msra.mxu0 0.0
      %1292 = vmatprep.subr.mxu0 0.0
      %1293 = vmatpush1.msra.mxu0 0.0
      %1294 = vmatprep.subr.mxu0 0.0
      %1295 = vmatpush1.msra.mxu0 0.0
      %1296 = vmatprep.subr.mxu0 0.0
      %1297 = vmatpush1.msra.mxu0 0.0
      %1298 = vmatprep.subr.mxu0 0.0
      %1299 = vmatpush1.msra.mxu0 0.0
      %1300 = vmatprep.mubr.f32.mxu0 0.0
      %v1301 = vand.u32 %v1173, 4294901760
      %v1302 = vsub.f32 %v1173, %v1301
      %v1303 = vand.u32 %v1302, 4294901760
      %v1304 = vsub.f32 %v1302, %v1303
      %v1305 = vand.u32 %v1304, 4294901760
      %1306 = vmatmul.mubr.f32.gmra.mrb[0].mxu0 %v1305
      %v1307 = vpop.f32.mrb[0].mxu0
      %v1308 = vadd.f32 0.0, %v1307
      %v1309 = vpop.f32.mrb[0].mxu0
      %v1310 = vadd.f32 0.0, %v1309
      %1311 = vmatprep.mubr.f32.mxu0 0.0
      %v1312 = vand.u32 %v1176, 4294901760
      %v1313 = vsub.f32 %v1176, %v1312
      %v1314 = vand.u32 %v1313, 4294901760
      %v1315 = vsub.f32 %v1313, %v1314
      %v1316 = vand.u32 %v1315, 4294901760
      %1317 = vmatmul.mubr.f32.gmra.mrb[0].mxu0 %v1316
      %v1318 = vpop.f32.mrb[0].mxu0
      %v1319 = vadd.f32 0.0, %v1318
      %v1320 = vpop.f32.mrb[0].mxu0
      %v1321 = vadd.f32 0.0, %v1320
      %1322 = vmatprep.mubr.f32.mxu0 0.0
      %v1323 = vand.u32 %v1179, 4294901760
      %v1324 = vsub.f32 %v1179, %v1323
      %v1325 = vand.u32 %v1324, 4294901760
      %v1326 = vsub.f32 %v1324, %v1325
      %v1327 = vand.u32 %v1326, 4294901760
      %1328 = vmatmul.mubr.f32.gmra.mrb[0].mxu0 %v1327
      %v1329 = vpop.f32.mrb[0].mxu0
      %v1330 = vadd.f32 0.0, %v1329
      %v1331 = vpop.f32.mrb[0].mxu0
      %v1332 = vadd.f32 0.0, %v1331
      %1333 = vmatprep.mubr.f32.mxu0 0.0
      %v1334 = vand.u32 %v1182, 4294901760
      %v1335 = vsub.f32 %v1182, %v1334
      %v1336 = vand.u32 %v1335, 4294901760
      %v1337 = vsub.f32 %v1335, %v1336
      %v1338 = vand.u32 %v1337, 4294901760
      %1339 = vmatmul.mubr.f32.gmra.mrb[0].mxu0 %v1338
      %v1340 = vpop.f32.mrb[0].mxu0
      %v1341 = vadd.f32 0.0, %v1340
      %v1342 = vpop.f32.mrb[0].mxu0
      %v1343 = vadd.f32 0.0, %v1342
      %1344 = vmatprep.mubr.f32.mxu0 0.0
      %v1345 = vand.u32 %v1185, 4294901760
      %v1346 = vsub.f32 %v1185, %v1345
      %v1347 = vand.u32 %v1346, 4294901760
      %v1348 = vsub.f32 %v1346, %v1347
      %v1349 = vand.u32 %v1348, 4294901760
      %1350 = vmatmul.mubr.f32.gmra.mrb[0].mxu0 %v1349
      %v1351 = vpop.f32.mrb[0].mxu0
      %v1352 = vadd.f32 0.0, %v1351
      %v1353 = vpop.f32.mrb[0].mxu0
      %v1354 = vadd.f32 0.0, %v1353
      %1355 = vmatprep.mubr.f32.mxu0 0.0
      %v1356 = vand.u32 %v1188, 4294901760
      %v1357 = vsub.f32 %v1188, %v1356
      %v1358 = vand.u32 %v1357, 4294901760
      %v1359 = vsub.f32 %v1357, %v1358
      %v1360 = vand.u32 %v1359, 4294901760
      %1361 = vmatmul.mubr.f32.gmra.mrb[0].mxu0 %v1360
      %v1362 = vpop.f32.mrb[0].mxu0
      %v1363 = vadd.f32 0.0, %v1362
      %v1364 = vpop.f32.mrb[0].mxu0
      %v1365 = vadd.f32 0.0, %v1364
      %1366 = vmatprep.mubr.f32.mxu0 0.0
      %v1367 = vand.u32 %v1191, 4294901760
      %v1368 = vsub.f32 %v1191, %v1367
      %v1369 = vand.u32 %v1368, 4294901760
      %v1370 = vsub.f32 %v1368, %v1369
      %v1371 = vand.u32 %v1370, 4294901760
      %1372 = vmatmul.mubr.f32.gmra.mrb[0].mxu0 %v1371
      %v1373 = vpop.f32.mrb[0].mxu0
      %v1374 = vadd.f32 0.0, %v1373
      %v1375 = vpop.f32.mrb[0].mxu0
      %v1376 = vadd.f32 0.0, %v1375
      %1377 = vmatprep.mubr.f32.mxu0 0.0
      %v1378 = vand.u32 %v1194, 4294901760
      %v1379 = vsub.f32 %v1194, %v1378
      %v1380 = vand.u32 %v1379, 4294901760
      %v1381 = vsub.f32 %v1379, %v1380
      %v1382 = vand.u32 %v1381, 4294901760
      %1383 = vmatmul.mubr.f32.gmra.mrb[0].mxu0 %v1382
      %v1384 = vpop.f32.mrb[0].mxu0
      %v1385 = vadd.f32 0.0, %v1384
      %v1386 = vpop.f32.mrb[0].mxu0
      %v1387 = vadd.f32 0.0, %v1386
      %1388 = vmatprep.mubr.f32.mxu0 0.0
      %v1389 = vand.u32 %v1197, 4294901760
      %v1390 = vsub.f32 %v1197, %v1389
      %v1391 = vand.u32 %v1390, 4294901760
      %v1392 = vsub.f32 %v1390, %v1391
      %v1393 = vand.u32 %v1392, 4294901760
      %1394 = vmatmul.mubr.f32.gmra.mrb[0].mxu0 %v1393
      %v1395 = vpop.f32.mrb[0].mxu0
      %v1396 = vadd.f32 0.0, %v1395
      %v1397 = vpop.f32.mrb[0].mxu0
      %v1398 = vadd.f32 0.0, %v1397
      %1399 = vmatprep.mubr.f32.mxu0 0.0
      %v1400 = vand.u32 %v1200, 4294901760
      %v1401 = vsub.f32 %v1200, %v1400
      %v1402 = vand.u32 %v1401, 4294901760
      %v1403 = vsub.f32 %v1401, %v1402
      %v1404 = vand.u32 %v1403, 4294901760
      %1405 = vmatmul.mubr.f32.gmra.mrb[0].mxu0 %v1404
      %v1406 = vpop.f32.mrb[0].mxu0
      %v1407 = vadd.f32 0.0, %v1406
      %v1408 = vpop.f32.mrb[0].mxu0
      %v1409 = vadd.f32 0.0, %v1408
      %1410 = vmatprep.mubr.f32.mxu0 0.0
      %v1411 = vand.u32 %v1203, 4294901760
      %v1412 = vsub.f32 %v1203, %v1411
      %v1413 = vand.u32 %v1412, 4294901760
      %v1414 = vsub.f32 %v1412, %v1413
      %v1415 = vand.u32 %v1414, 4294901760
      %1416 = vmatmul.mubr.f32.gmra.mrb[0].mxu0 %v1415
      %v1417 = vpop.f32.mrb[0].mxu0
      %v1418 = vadd.f32 0.0, %v1417
      %v1419 = vpop.f32.mrb[0].mxu0
      %v1420 = vadd.f32 0.0, %v1419
      %1421 = vmatprep.mubr.f32.mxu0 0.0
      %v1422 = vand.u32 %v1206, 4294901760
      %v1423 = vsub.f32 %v1206, %v1422
      %v1424 = vand.u32 %v1423, 4294901760
      %v1425 = vsub.f32 %v1423, %v1424
      %v1426 = vand.u32 %v1425, 4294901760
      %1427 = vmatmul.mubr.f32.gmra.mrb[0].mxu0 %v1426
      %v1428 = vpop.f32.mrb[0].mxu0
      %v1429 = vadd.f32 0.0, %v1428
      %v1430 = vpop.f32.mrb[0].mxu0
      %v1431 = vadd.f32 0.0, %v1430
      %1432 = vmatprep.mubr.f32.mxu0 0.0
      %v1433 = vand.u32 %v1209, 4294901760
      %v1434 = vsub.f32 %v1209, %v1433
      %v1435 = vand.u32 %v1434, 4294901760
      %v1436 = vsub.f32 %v1434, %v1435
      %v1437 = vand.u32 %v1436, 4294901760
      %1438 = vmatmul.mubr.f32.gmra.mrb[0].mxu0 %v1437
      %v1439 = vpop.f32.mrb[0].mxu0
      %v1440 = vadd.f32 0.0, %v1439
      %v1441 = vpop.f32.mrb[0].mxu0
      %v1442 = vadd.f32 0.0, %v1441
      %1443 = vmatprep.mubr.f32.mxu0 0.0
      %v1444 = vand.u32 %v1212, 4294901760
      %v1445 = vsub.f32 %v1212, %v1444
      %v1446 = vand.u32 %v1445, 4294901760
      %v1447 = vsub.f32 %v1445, %v1446
      %v1448 = vand.u32 %v1447, 4294901760
      %1449 = vmatmul.mubr.f32.gmra.mrb[0].mxu0 %v1448
      %v1450 = vpop.f32.mrb[0].mxu0
      %v1451 = vadd.f32 0.0, %v1450
      %v1452 = vpop.f32.mrb[0].mxu0
      %v1453 = vadd.f32 0.0, %v1452
      %1454 = vmatprep.mubr.f32.mxu0 0.0
      %v1455 = vand.u32 %v1215, 4294901760
      %v1456 = vsub.f32 %v1215, %v1455
      %v1457 = vand.u32 %v1456, 4294901760
      %v1458 = vsub.f32 %v1456, %v1457
      %v1459 = vand.u32 %v1458, 4294901760
      %1460 = vmatmul.mubr.f32.gmra.mrb[0].mxu0 %v1459
      %v1461 = vpop.f32.mrb[0].mxu0
      %v1462 = vadd.f32 0.0, %v1461
      %v1463 = vpop.f32.mrb[0].mxu0
      %v1464 = vadd.f32 0.0, %v1463
      %1465 = vmatprep.mubr.f32.mxu0 0.0
      %v1466 = vand.u32 %v1218, 4294901760
      %v1467 = vsub.f32 %v1218, %v1466
      %v1468 = vand.u32 %v1467, 4294901760
      %v1469 = vsub.f32 %v1467, %v1468
      %v1470 = vand.u32 %v1469, 4294901760
      %1471 = vmatmul.mubr.f32.gmra.mrb[0].mxu0 %v1470
      %v1472 = vpop.f32.mrb[0].mxu0
      %v1473 = vadd.f32 0.0, %v1472
      %v1474 = vpop.f32.mrb[0].mxu0
      %v1475 = vadd.f32 0.0, %v1474
      %1476 = vdwg.mxu0
      %v1477 = vand.u32 %v1157, 4294901760
      %v1478 = vsub.f32 %v1157, %v1477
      %v1479 = vand.u32 %v1478, 4294901760
      %v1480 = vsub.f32 %v1478, %v1479
      %v1481 = vand.u32 %v1480, 4294901760
      %1482 = vmatprep.subr.mxu0 %v1481
      %v1483 = vand.u32 %v1156, 4294901760
      %v1484 = vsub.f32 %v1156, %v1483
      %v1485 = vand.u32 %v1484, 4294901760
      %v1486 = vsub.f32 %v1484, %v1485
      %v1487 = vand.u32 %v1486, 4294901760
      %1488 = vmatpush1.msra.mxu0 %v1487
      %v1489 = vand.u32 %v1159, 4294901760
      %v1490 = vsub.f32 %v1159, %v1489
      %v1491 = vand.u32 %v1490, 4294901760
      %v1492 = vsub.f32 %v1490, %v1491
      %v1493 = vand.u32 %v1492, 4294901760
      %1494 = vmatprep.subr.mxu0 %v1493
      %v1495 = vand.u32 %v1158, 4294901760
      %v1496 = vsub.f32 %v1158, %v1495
      %v1497 = vand.u32 %v1496, 4294901760
      %v1498 = vsub.f32 %v1496, %v1497
      %v1499 = vand.u32 %v1498, 4294901760
      %1500 = vmatpush1.msra.mxu0 %v1499
      %v1501 = vand.u32 %v1161, 4294901760
      %v1502 = vsub.f32 %v1161, %v1501
      %v1503 = vand.u32 %v1502, 4294901760
      %v1504 = vsub.f32 %v1502, %v1503
      %v1505 = vand.u32 %v1504, 4294901760
      %1506 = vmatprep.subr.mxu0 %v1505
      %v1507 = vand.u32 %v1160, 4294901760
      %v1508 = vsub.f32 %v1160, %v1507
      %v1509 = vand.u32 %v1508, 4294901760
      %v1510 = vsub.f32 %v1508, %v1509
      %v1511 = vand.u32 %v1510, 4294901760
      %1512 = vmatpush1.msra.mxu0 %v1511
      %v1513 = vand.u32 %v1163, 4294901760
      %v1514 = vsub.f32 %v1163, %v1513
      %v1515 = vand.u32 %v1514, 4294901760
      %v1516 = vsub.f32 %v1514, %v1515
      %v1517 = vand.u32 %v1516, 4294901760
      %1518 = vmatprep.subr.mxu0 %v1517
      %v1519 = vand.u32 %v1162, 4294901760
      %v1520 = vsub.f32 %v1162, %v1519
      %v1521 = vand.u32 %v1520, 4294901760
      %v1522 = vsub.f32 %v1520, %v1521
      %v1523 = vand.u32 %v1522, 4294901760
      %1524 = vmatpush1.msra.mxu0 %v1523
      %v1525 = vand.u32 %v1165, 4294901760
      %v1526 = vsub.f32 %v1165, %v1525
      %v1527 = vand.u32 %v1526, 4294901760
      %v1528 = vsub.f32 %v1526, %v1527
      %v1529 = vand.u32 %v1528, 4294901760
      %1530 = vmatprep.subr.mxu0 %v1529
      %v1531 = vand.u32 %v1164, 4294901760
      %v1532 = vsub.f32 %v1164, %v1531
      %v1533 = vand.u32 %v1532, 4294901760
      %v1534 = vsub.f32 %v1532, %v1533
      %v1535 = vand.u32 %v1534, 4294901760
      %1536 = vmatpush1.msra.mxu0 %v1535
      %v1537 = vand.u32 %v1167, 4294901760
      %v1538 = vsub.f32 %v1167, %v1537
      %v1539 = vand.u32 %v1538, 4294901760
      %v1540 = vsub.f32 %v1538, %v1539
      %v1541 = vand.u32 %v1540, 4294901760
      %1542 = vmatprep.subr.mxu0 %v1541
      %v1543 = vand.u32 %v1166, 4294901760
      %v1544 = vsub.f32 %v1166, %v1543
      %v1545 = vand.u32 %v1544, 4294901760
      %v1546 = vsub.f32 %v1544, %v1545
      %v1547 = vand.u32 %v1546, 4294901760
      %1548 = vmatpush1.msra.mxu0 %v1547
      %v1549 = vand.u32 %v1169, 4294901760
      %v1550 = vsub.f32 %v1169, %v1549
      %v1551 = vand.u32 %v1550, 4294901760
      %v1552 = vsub.f32 %v1550, %v1551
      %v1553 = vand.u32 %v1552, 4294901760
      %1554 = vmatprep.subr.mxu0 %v1553
      %v1555 = vand.u32 %v1168, 4294901760
      %v1556 = vsub.f32 %v1168, %v1555
      %v1557 = vand.u32 %v1556, 4294901760
      %v1558 = vsub.f32 %v1556, %v1557
      %v1559 = vand.u32 %v1558, 4294901760
      %1560 = vmatpush1.msra.mxu0 %v1559
      %v1561 = vand.u32 %v1171, 4294901760
      %v1562 = vsub.f32 %v1171, %v1561
      %v1563 = vand.u32 %v1562, 4294901760
      %v1564 = vsub.f32 %v1562, %v1563
      %v1565 = vand.u32 %v1564, 4294901760
      %1566 = vmatprep.subr.mxu0 %v1565
      %v1567 = vand.u32 %v1170, 4294901760
      %v1568 = vsub.f32 %v1170, %v1567
      %v1569 = vand.u32 %v1568, 4294901760
      %v1570 = vsub.f32 %v1568, %v1569
      %v1571 = vand.u32 %v1570, 4294901760
      %1572 = vmatpush1.msra.mxu0 %v1571
      %1573 = vmatprep.subr.mxu0 0.0
      %1574 = vmatpush1.msra.mxu0 0.0
      %1575 = vmatprep.subr.mxu0 0.0
      %1576 = vmatpush1.msra.mxu0 0.0
      %1577 = vmatprep.subr.mxu0 0.0
      %1578 = vmatpush1.msra.mxu0 0.0
      %1579 = vmatprep.subr.mxu0 0.0
      %1580 = vmatpush1.msra.mxu0 0.0
      %1581 = vmatprep.subr.mxu0 0.0
      %1582 = vmatpush1.msra.mxu0 0.0
      %1583 = vmatprep.subr.mxu0 0.0
      %1584 = vmatpush1.msra.mxu0 0.0
      %1585 = vmatprep.subr.mxu0 0.0
      %1586 = vmatpush1.msra.mxu0 0.0
      %1587 = vmatprep.subr.mxu0 0.0
      %1588 = vmatpush1.msra.mxu0 0.0
      %1589 = vmatprep.subr.mxu0 0.0
      %1590 = vmatpush1.msra.mxu0 0.0
      %1591 = vmatprep.subr.mxu0 0.0
      %1592 = vmatpush1.msra.mxu0 0.0
      %1593 = vmatprep.subr.mxu0 0.0
      %1594 = vmatpush1.msra.mxu0 0.0
      %1595 = vmatprep.subr.mxu0 0.0
      %1596 = vmatpush1.msra.mxu0 0.0
      %1597 = vmatprep.subr.mxu0 0.0
      %1598 = vmatpush1.msra.mxu0 0.0
      %1599 = vmatprep.subr.mxu0 0.0
      %1600 = vmatpush1.msra.mxu0 0.0
      %1601 = vmatprep.subr.mxu0 0.0
      %1602 = vmatpush1.msra.mxu0 0.0
      %1603 = vmatprep.subr.mxu0 0.0
      %1604 = vmatpush1.msra.mxu0 0.0
      %1605 = vmatprep.subr.mxu0 0.0
      %1606 = vmatpush1.msra.mxu0 0.0
      %1607 = vmatprep.subr.mxu0 0.0
      %1608 = vmatpush1.msra.mxu0 0.0
      %1609 = vmatprep.subr.mxu0 0.0
      %1610 = vmatpush1.msra.mxu0 0.0
      %1611 = vmatprep.subr.mxu0 0.0
      %1612 = vmatpush1.msra.mxu0 0.0
      %1613 = vmatprep.subr.mxu0 0.0
      %1614 = vmatpush1.msra.mxu0 0.0
      %1615 = vmatprep.subr.mxu0 0.0
      %1616 = vmatpush1.msra.mxu0 0.0
      %1617 = vmatprep.subr.mxu0 0.0
      %1618 = vmatpush1.msra.mxu0 0.0
      %1619 = vmatprep.subr.mxu0 0.0
      %1620 = vmatpush1.msra.mxu0 0.0
      %1621 = vmatprep.mubr.f32.mxu0 0.0
      %v1622 = vand.u32 %v1173, 4294901760
      %1623 = vmatmul.mubr.f32.gmra.mrb[0].mxu0 %v1622
      %v1624 = vpop.f32.mrb[0].mxu0
      %v1625 = vadd.f32 %v1308, %v1624
      %v1626 = vpop.f32.mrb[0].mxu0
      %v1627 = vadd.f32 %v1310, %v1626
      %1628 = vmatprep.mubr.f32.mxu0 0.0
      %v1629 = vand.u32 %v1176, 4294901760
      %1630 = vmatmul.mubr.f32.gmra.mrb[0].mxu0 %v1629
      %v1631 = vpop.f32.mrb[0].mxu0
      %v1632 = vadd.f32 %v1319, %v1631
      %v1633 = vpop.f32.mrb[0].mxu0
      %v1634 = vadd.f32 %v1321, %v1633
      %1635 = vmatprep.mubr.f32.mxu0 0.0
      %v1636 = vand.u32 %v1179, 4294901760
      %1637 = vmatmul.mubr.f32.gmra.mrb[0].mxu0 %v1636
      %v1638 = vpop.f32.mrb[0].mxu0
      %v1639 = vadd.f32 %v1330, %v1638
      %v1640 = vpop.f32.mrb[0].mxu0
      %v1641 = vadd.f32 %v1332, %v1640
      %1642 = vmatprep.mubr.f32.mxu0 0.0
      %v1643 = vand.u32 %v1182, 4294901760
      %1644 = vmatmul.mubr.f32.gmra.mrb[0].mxu0 %v1643
      %v1645 = vpop.f32.mrb[0].mxu0
      %v1646 = vadd.f32 %v1341, %v1645
      %v1647 = vpop.f32.mrb[0].mxu0
      %v1648 = vadd.f32 %v1343, %v1647
      %1649 = vmatprep.mubr.f32.mxu0 0.0
      %v1650 = vand.u32 %v1185, 4294901760
      %1651 = vmatmul.mubr.f32.gmra.mrb[0].mxu0 %v1650
      %v1652 = vpop.f32.mrb[0].mxu0
      %v1653 = vadd.f32 %v1352, %v1652
      %v1654 = vpop.f32.mrb[0].mxu0
      %v1655 = vadd.f32 %v1354, %v1654
      %1656 = vmatprep.mubr.f32.mxu0 0.0
      %v1657 = vand.u32 %v1188, 4294901760
      %1658 = vmatmul.mubr.f32.gmra.mrb[0].mxu0 %v1657
      %v1659 = vpop.f32.mrb[0].mxu0
      %v1660 = vadd.f32 %v1363, %v1659
      %v1661 = vpop.f32.mrb[0].mxu0
      %v1662 = vadd.f32 %v1365, %v1661
      %1663 = vmatprep.mubr.f32.mxu0 0.0
      %v1664 = vand.u32 %v1191, 4294901760
      %1665 = vmatmul.mubr.f32.gmra.mrb[0].mxu0 %v1664
      %v1666 = vpop.f32.mrb[0].mxu0
      %v1667 = vadd.f32 %v1374, %v1666
      %v1668 = vpop.f32.mrb[0].mxu0
      %v1669 = vadd.f32 %v1376, %v1668
      %1670 = vmatprep.mubr.f32.mxu0 0.0
      %v1671 = vand.u32 %v1194, 4294901760
      %1672 = vmatmul.mubr.f32.gmra.mrb[0].mxu0 %v1671
      %v1673 = vpop.f32.mrb[0].mxu0
      %v1674 = vadd.f32 %v1385, %v1673
      %v1675 = vpop.f32.mrb[0].mxu0
      %v1676 = vadd.f32 %v1387, %v1675
      %1677 = vmatprep.mubr.f32.mxu0 0.0
      %v1678 = vand.u32 %v1197, 4294901760
      %1679 = vmatmul.mubr.f32.gmra.mrb[0].mxu0 %v1678
      %v1680 = vpop.f32.mrb[0].mxu0
      %v1681 = vadd.f32 %v1396, %v1680
      %v1682 = vpop.f32.mrb[0].mxu0
      %v1683 = vadd.f32 %v1398, %v1682
      %1684 = vmatprep.mubr.f32.mxu0 0.0
      %v1685 = vand.u32 %v1200, 4294901760
      %1686 = vmatmul.mubr.f32.gmra.mrb[0].mxu0 %v1685
      %v1687 = vpop.f32.mrb[0].mxu0
      %v1688 = vadd.f32 %v1407, %v1687
      %v1689 = vpop.f32.mrb[0].mxu0
      %v1690 = vadd.f32 %v1409, %v1689
      %1691 = vmatprep.mubr.f32.mxu0 0.0
      %v1692 = vand.u32 %v1203, 4294901760
      %1693 = vmatmul.mubr.f32.gmra.mrb[0].mxu0 %v1692
      %v1694 = vpop.f32.mrb[0].mxu0
      %v1695 = vadd.f32 %v1418, %v1694
      %v1696 = vpop.f32.mrb[0].mxu0
      %v1697 = vadd.f32 %v1420, %v1696
      %1698 = vmatprep.mubr.f32.mxu0 0.0
      %v1699 = vand.u32 %v1206, 4294901760
      %1700 = vmatmul.mubr.f32.gmra.mrb[0].mxu0 %v1699
      %v1701 = vpop.f32.mrb[0].mxu0
      %v1702 = vadd.f32 %v1429, %v1701
      %v1703 = vpop.f32.mrb[0].mxu0
      %v1704 = vadd.f32 %v1431, %v1703
      %1705 = vmatprep.mubr.f32.mxu0 0.0
      %v1706 = vand.u32 %v1209, 4294901760
      %1707 = vmatmul.mubr.f32.gmra.mrb[0].mxu0 %v1706
      %v1708 = vpop.f32.mrb[0].mxu0
      %v1709 = vadd.f32 %v1440, %v1708
      %v1710 = vpop.f32.mrb[0].mxu0
      %v1711 = vadd.f32 %v1442, %v1710
      %1712 = vmatprep.mubr.f32.mxu0 0.0
      %v1713 = vand.u32 %v1212, 4294901760
      %1714 = vmatmul.mubr.f32.gmra.mrb[0].mxu0 %v1713
      %v1715 = vpop.f32.mrb[0].mxu0
      %v1716 = vadd.f32 %v1451, %v1715
      %v1717 = vpop.f32.mrb[0].mxu0
      %v1718 = vadd.f32 %v1453, %v1717
      %1719 = vmatprep.mubr.f32.mxu0 0.0
      %v1720 = vand.u32 %v1215, 4294901760
      %1721 = vmatmul.mubr.f32.gmra.mrb[0].mxu0 %v1720
      %v1722 = vpop.f32.mrb[0].mxu0
      %v1723 = vadd.f32 %v1462, %v1722
      %v1724 = vpop.f32.mrb[0].mxu0
      %v1725 = vadd.f32 %v1464, %v1724
      %1726 = vmatprep.mubr.f32.mxu0 0.0
      %v1727 = vand.u32 %v1218, 4294901760
      %1728 = vmatmul.mubr.f32.gmra.mrb[0].mxu0 %v1727
      %v1729 = vpop.f32.mrb[0].mxu0
      %v1730 = vadd.f32 %v1473, %v1729
      %v1731 = vpop.f32.mrb[0].mxu0
      %v1732 = vadd.f32 %v1475, %v1731
      %1733 = vdwg.mxu0
      %v1734 = vand.u32 %v1157, 4294901760
      %v1735 = vsub.f32 %v1157, %v1734
      %1736 = vmatprep.subr.mxu0 %v1735
      %v1737 = vand.u32 %v1156, 4294901760
      %v1738 = vsub.f32 %v1156, %v1737
      %1739 = vmatpush1.msra.mxu0 %v1738
      %v1740 = vand.u32 %v1159, 4294901760
      %v1741 = vsub.f32 %v1159, %v1740
      %1742 = vmatprep.subr.mxu0 %v1741
      %v1743 = vand.u32 %v1158, 4294901760
      %v1744 = vsub.f32 %v1158, %v1743
      %1745 = vmatpush1.msra.mxu0 %v1744
      %v1746 = vand.u32 %v1161, 4294901760
      %v1747 = vsub.f32 %v1161, %v1746
      %1748 = vmatprep.subr.mxu0 %v1747
      %v1749 = vand.u32 %v1160, 4294901760
      %v1750 = vsub.f32 %v1160, %v1749
      %1751 = vmatpush1.msra.mxu0 %v1750
      %v1752 = vand.u32 %v1163, 4294901760
      %v1753 = vsub.f32 %v1163, %v1752
      %1754 = vmatprep.subr.mxu0 %v1753
      %v1755 = vand.u32 %v1162, 4294901760
      %v1756 = vsub.f32 %v1162, %v1755
      %1757 = vmatpush1.msra.mxu0 %v1756
      %v1758 = vand.u32 %v1165, 4294901760
      %v1759 = vsub.f32 %v1165, %v1758
      %1760 = vmatprep.subr.mxu0 %v1759
      %v1761 = vand.u32 %v1164, 4294901760
      %v1762 = vsub.f32 %v1164, %v1761
      %1763 = vmatpush1.msra.mxu0 %v1762
      %v1764 = vand.u32 %v1167, 4294901760
      %v1765 = vsub.f32 %v1167, %v1764
      %1766 = vmatprep.subr.mxu0 %v1765
      %v1767 = vand.u32 %v1166, 4294901760
      %v1768 = vsub.f32 %v1166, %v1767
      %1769 = vmatpush1.msra.mxu0 %v1768
      %v1770 = vand.u32 %v1169, 4294901760
      %v1771 = vsub.f32 %v1169, %v1770
      %1772 = vmatprep.subr.mxu0 %v1771
      %v1773 = vand.u32 %v1168, 4294901760
      %v1774 = vsub.f32 %v1168, %v1773
      %1775 = vmatpush1.msra.mxu0 %v1774
      %v1776 = vand.u32 %v1171, 4294901760
      %v1777 = vsub.f32 %v1171, %v1776
      %1778 = vmatprep.subr.mxu0 %v1777
      %v1779 = vand.u32 %v1170, 4294901760
      %v1780 = vsub.f32 %v1170, %v1779
      %1781 = vmatpush1.msra.mxu0 %v1780
      %1782 = vmatprep.subr.mxu0 0.0
      %1783 = vmatpush1.msra.mxu0 0.0
      %1784 = vmatprep.subr.mxu0 0.0
      %1785 = vmatpush1.msra.mxu0 0.0
      %1786 = vmatprep.subr.mxu0 0.0
      %1787 = vmatpush1.msra.mxu0 0.0
      %1788 = vmatprep.subr.mxu0 0.0
      %1789 = vmatpush1.msra.mxu0 0.0
      %1790 = vmatprep.subr.mxu0 0.0
      %1791 = vmatpush1.msra.mxu0 0.0
      %1792 = vmatprep.subr.mxu0 0.0
      %1793 = vmatpush1.msra.mxu0 0.0
      %1794 = vmatprep.subr.mxu0 0.0
      %1795 = vmatpush1.msra.mxu0 0.0
      %1796 = vmatprep.subr.mxu0 0.0
      %1797 = vmatpush1.msra.mxu0 0.0
      %1798 = vmatprep.subr.mxu0 0.0
      %1799 = vmatpush1.msra.mxu0 0.0
      %1800 = vmatprep.subr.mxu0 0.0
      %1801 = vmatpush1.msra.mxu0 0.0
      %1802 = vmatprep.subr.mxu0 0.0
      %1803 = vmatpush1.msra.mxu0 0.0
      %1804 = vmatprep.subr.mxu0 0.0
      %1805 = vmatpush1.msra.mxu0 0.0
      %1806 = vmatprep.subr.mxu0 0.0
      %1807 = vmatpush1.msra.mxu0 0.0
      %1808 = vmatprep.subr.mxu0 0.0
      %1809 = vmatpush1.msra.mxu0 0.0
      %1810 = vmatprep.subr.mxu0 0.0
      %1811 = vmatpush1.msra.mxu0 0.0
      %1812 = vmatprep.subr.mxu0 0.0
      %1813 = vmatpush1.msra.mxu0 0.0
      %1814 = vmatprep.subr.mxu0 0.0
      %1815 = vmatpush1.msra.mxu0 0.0
      %1816 = vmatprep.subr.mxu0 0.0
      %1817 = vmatpush1.msra.mxu0 0.0
      %1818 = vmatprep.subr.mxu0 0.0
      %1819 = vmatpush1.msra.mxu0 0.0
      %1820 = vmatprep.subr.mxu0 0.0
      %1821 = vmatpush1.msra.mxu0 0.0
      %1822 = vmatprep.subr.mxu0 0.0
      %1823 = vmatpush1.msra.mxu0 0.0
      %1824 = vmatprep.subr.mxu0 0.0
      %1825 = vmatpush1.msra.mxu0 0.0
      %1826 = vmatprep.subr.mxu0 0.0
      %1827 = vmatpush1.msra.mxu0 0.0
      %1828 = vmatprep.subr.mxu0 0.0
      %1829 = vmatpush1.msra.mxu0 0.0
      %1830 = vmatprep.mubr.f32.mxu0 0.0
      %v1831 = vand.u32 %v1173, 4294901760
      %v1832 = vsub.f32 %v1173, %v1831
      %1833 = vmatmul.mubr.f32.gmra.mrb[0].mxu0 %v1832
      %v1834 = vpop.f32.mrb[0].mxu0
      %v1835 = vadd.f32 %v1625, %v1834
      %v1836 = vpop.f32.mrb[0].mxu0
      %v1837 = vadd.f32 %v1627, %v1836
      %1838 = vmatprep.mubr.f32.mxu0 0.0
      %v1839 = vand.u32 %v1176, 4294901760
      %v1840 = vsub.f32 %v1176, %v1839
      %1841 = vmatmul.mubr.f32.gmra.mrb[0].mxu0 %v1840
      %v1842 = vpop.f32.mrb[0].mxu0
      %v1843 = vadd.f32 %v1632, %v1842
      %v1844 = vpop.f32.mrb[0].mxu0
      %v1845 = vadd.f32 %v1634, %v1844
      %1846 = vmatprep.mubr.f32.mxu0 0.0
      %v1847 = vand.u32 %v1179, 4294901760
      %v1848 = vsub.f32 %v1179, %v1847
      %1849 = vmatmul.mubr.f32.gmra.mrb[0].mxu0 %v1848
      %v1850 = vpop.f32.mrb[0].mxu0
      %v1851 = vadd.f32 %v1639, %v1850
      %v1852 = vpop.f32.mrb[0].mxu0
      %v1853 = vadd.f32 %v1641, %v1852
      %1854 = vmatprep.mubr.f32.mxu0 0.0
      %v1855 = vand.u32 %v1182, 4294901760
      %v1856 = vsub.f32 %v1182, %v1855
      %1857 = vmatmul.mubr.f32.gmra.mrb[0].mxu0 %v1856
      %v1858 = vpop.f32.mrb[0].mxu0
      %v1859 = vadd.f32 %v1646, %v1858
      %v1860 = vpop.f32.mrb[0].mxu0
      %v1861 = vadd.f32 %v1648, %v1860
      %1862 = vmatprep.mubr.f32.mxu0 0.0
      %v1863 = vand.u32 %v1185, 4294901760
      %v1864 = vsub.f32 %v1185, %v1863
      %1865 = vmatmul.mubr.f32.gmra.mrb[0].mxu0 %v1864
      %v1866 = vpop.f32.mrb[0].mxu0
      %v1867 = vadd.f32 %v1653, %v1866
      %v1868 = vpop.f32.mrb[0].mxu0
      %v1869 = vadd.f32 %v1655, %v1868
      %1870 = vmatprep.mubr.f32.mxu0 0.0
      %v1871 = vand.u32 %v1188, 4294901760
      %v1872 = vsub.f32 %v1188, %v1871
      %1873 = vmatmul.mubr.f32.gmra.mrb[0].mxu0 %v1872
      %v1874 = vpop.f32.mrb[0].mxu0
      %v1875 = vadd.f32 %v1660, %v1874
      %v1876 = vpop.f32.mrb[0].mxu0
      %v1877 = vadd.f32 %v1662, %v1876
      %1878 = vmatprep.mubr.f32.mxu0 0.0
      %v1879 = vand.u32 %v1191, 4294901760
      %v1880 = vsub.f32 %v1191, %v1879
      %1881 = vmatmul.mubr.f32.gmra.mrb[0].mxu0 %v1880
      %v1882 = vpop.f32.mrb[0].mxu0
      %v1883 = vadd.f32 %v1667, %v1882
      %v1884 = vpop.f32.mrb[0].mxu0
      %v1885 = vadd.f32 %v1669, %v1884
      %1886 = vmatprep.mubr.f32.mxu0 0.0
      %v1887 = vand.u32 %v1194, 4294901760
      %v1888 = vsub.f32 %v1194, %v1887
      %1889 = vmatmul.mubr.f32.gmra.mrb[0].mxu0 %v1888
      %v1890 = vpop.f32.mrb[0].mxu0
      %v1891 = vadd.f32 %v1674, %v1890
      %v1892 = vpop.f32.mrb[0].mxu0
      %v1893 = vadd.f32 %v1676, %v1892
      %1894 = vmatprep.mubr.f32.mxu0 0.0
      %v1895 = vand.u32 %v1197, 4294901760
      %v1896 = vsub.f32 %v1197, %v1895
      %1897 = vmatmul.mubr.f32.gmra.mrb[0].mxu0 %v1896
      %v1898 = vpop.f32.mrb[0].mxu0
      %v1899 = vadd.f32 %v1681, %v1898
      %v1900 = vpop.f32.mrb[0].mxu0
      %v1901 = vadd.f32 %v1683, %v1900
      %1902 = vmatprep.mubr.f32.mxu0 0.0
      %v1903 = vand.u32 %v1200, 4294901760
      %v1904 = vsub.f32 %v1200, %v1903
      %1905 = vmatmul.mubr.f32.gmra.mrb[0].mxu0 %v1904
      %v1906 = vpop.f32.mrb[0].mxu0
      %v1907 = vadd.f32 %v1688, %v1906
      %v1908 = vpop.f32.mrb[0].mxu0
      %v1909 = vadd.f32 %v1690, %v1908
      %1910 = vmatprep.mubr.f32.mxu0 0.0
      %v1911 = vand.u32 %v1203, 4294901760
      %v1912 = vsub.f32 %v1203, %v1911
      %1913 = vmatmul.mubr.f32.gmra.mrb[0].mxu0 %v1912
      %v1914 = vpop.f32.mrb[0].mxu0
      %v1915 = vadd.f32 %v1695, %v1914
      %v1916 = vpop.f32.mrb[0].mxu0
      %v1917 = vadd.f32 %v1697, %v1916
      %1918 = vmatprep.mubr.f32.mxu0 0.0
      %v1919 = vand.u32 %v1206, 4294901760
      %v1920 = vsub.f32 %v1206, %v1919
      %1921 = vmatmul.mubr.f32.gmra.mrb[0].mxu0 %v1920
      %v1922 = vpop.f32.mrb[0].mxu0
      %v1923 = vadd.f32 %v1702, %v1922
      %v1924 = vpop.f32.mrb[0].mxu0
      %v1925 = vadd.f32 %v1704, %v1924
      %1926 = vmatprep.mubr.f32.mxu0 0.0
      %v1927 = vand.u32 %v1209, 4294901760
      %v1928 = vsub.f32 %v1209, %v1927
      %1929 = vmatmul.mubr.f32.gmra.mrb[0].mxu0 %v1928
      %v1930 = vpop.f32.mrb[0].mxu0
      %v1931 = vadd.f32 %v1709, %v1930
      %v1932 = vpop.f32.mrb[0].mxu0
      %v1933 = vadd.f32 %v1711, %v1932
      %1934 = vmatprep.mubr.f32.mxu0 0.0
      %v1935 = vand.u32 %v1212, 4294901760
      %v1936 = vsub.f32 %v1212, %v1935
      %1937 = vmatmul.mubr.f32.gmra.mrb[0].mxu0 %v1936
      %v1938 = vpop.f32.mrb[0].mxu0
      %v1939 = vadd.f32 %v1716, %v1938
      %v1940 = vpop.f32.mrb[0].mxu0
      %v1941 = vadd.f32 %v1718, %v1940
      %1942 = vmatprep.mubr.f32.mxu0 0.0
      %v1943 = vand.u32 %v1215, 4294901760
      %v1944 = vsub.f32 %v1215, %v1943
      %1945 = vmatmul.mubr.f32.gmra.mrb[0].mxu0 %v1944
      %v1946 = vpop.f32.mrb[0].mxu0
      %v1947 = vadd.f32 %v1723, %v1946
      %v1948 = vpop.f32.mrb[0].mxu0
      %v1949 = vadd.f32 %v1725, %v1948
      %1950 = vmatprep.mubr.f32.mxu0 0.0
      %v1951 = vand.u32 %v1218, 4294901760
      %v1952 = vsub.f32 %v1218, %v1951
      %1953 = vmatmul.mubr.f32.gmra.mrb[0].mxu0 %v1952
      %v1954 = vpop.f32.mrb[0].mxu0
      %v1955 = vadd.f32 %v1730, %v1954
      %v1956 = vpop.f32.mrb[0].mxu0
      %v1957 = vadd.f32 %v1732, %v1956
      %1958 = vdwg.mxu0
      %v1959 = vand.u32 %v1157, 4294901760
      %1960 = vmatprep.subr.mxu0 %v1959
      %v1961 = vand.u32 %v1156, 4294901760
      %1962 = vmatpush1.msra.mxu0 %v1961
      %v1963 = vand.u32 %v1159, 4294901760
      %1964 = vmatprep.subr.mxu0 %v1963
      %v1965 = vand.u32 %v1158, 4294901760
      %1966 = vmatpush1.msra.mxu0 %v1965
      %v1967 = vand.u32 %v1161, 4294901760
      %1968 = vmatprep.subr.mxu0 %v1967
      %v1969 = vand.u32 %v1160, 4294901760
      %1970 = vmatpush1.msra.mxu0 %v1969
      %v1971 = vand.u32 %v1163, 4294901760
      %1972 = vmatprep.subr.mxu0 %v1971
      %v1973 = vand.u32 %v1162, 4294901760
      %1974 = vmatpush1.msra.mxu0 %v1973
      %v1975 = vand.u32 %v1165, 4294901760
      %1976 = vmatprep.subr.mxu0 %v1975
      %v1977 = vand.u32 %v1164, 4294901760
      %1978 = vmatpush1.msra.mxu0 %v1977
      %v1979 = vand.u32 %v1167, 4294901760
      %1980 = vmatprep.subr.mxu0 %v1979
      %v1981 = vand.u32 %v1166, 4294901760
      %1982 = vmatpush1.msra.mxu0 %v1981
      %v1983 = vand.u32 %v1169, 4294901760
      %1984 = vmatprep.subr.mxu0 %v1983
      %v1985 = vand.u32 %v1168, 4294901760
      %1986 = vmatpush1.msra.mxu0 %v1985
      %v1987 = vand.u32 %v1171, 4294901760
      %1988 = vmatprep.subr.mxu0 %v1987
      %v1989 = vand.u32 %v1170, 4294901760
      %1990 = vmatpush1.msra.mxu0 %v1989
      %1991 = vmatprep.subr.mxu0 0.0
      %1992 = vmatpush1.msra.mxu0 0.0
      %1993 = vmatprep.subr.mxu0 0.0
      %1994 = vmatpush1.msra.mxu0 0.0
      %1995 = vmatprep.subr.mxu0 0.0
      %1996 = vmatpush1.msra.mxu0 0.0
      %1997 = vmatprep.subr.mxu0 0.0
      %1998 = vmatpush1.msra.mxu0 0.0
      %1999 = vmatprep.subr.mxu0 0.0
      %2000 = vmatpush1.msra.mxu0 0.0
      %2001 = vmatprep.subr.mxu0 0.0
      %2002 = vmatpush1.msra.mxu0 0.0
      %2003 = vmatprep.subr.mxu0 0.0
      %2004 = vmatpush1.msra.mxu0 0.0
      %2005 = vmatprep.subr.mxu0 0.0
      %2006 = vmatpush1.msra.mxu0 0.0
      %2007 = vmatprep.subr.mxu0 0.0
      %2008 = vmatpush1.msra.mxu0 0.0
      %2009 = vmatprep.subr.mxu0 0.0
      %2010 = vmatpush1.msra.mxu0 0.0
      %2011 = vmatprep.subr.mxu0 0.0
      %2012 = vmatpush1.msra.mxu0 0.0
      %2013 = vmatprep.subr.mxu0 0.0
      %2014 = vmatpush1.msra.mxu0 0.0
      %2015 = vmatprep.subr.mxu0 0.0
      %2016 = vmatpush1.msra.mxu0 0.0
      %2017 = vmatprep.subr.mxu0 0.0
      %2018 = vmatpush1.msra.mxu0 0.0
      %2019 = vmatprep.subr.mxu0 0.0
      %2020 = vmatpush1.msra.mxu0 0.0
      %2021 = vmatprep.subr.mxu0 0.0
      %2022 = vmatpush1.msra.mxu0 0.0
      %2023 = vmatprep.subr.mxu0 0.0
      %2024 = vmatpush1.msra.mxu0 0.0
      %2025 = vmatprep.subr.mxu0 0.0
      %2026 = vmatpush1.msra.mxu0 0.0
      %2027 = vmatprep.subr.mxu0 0.0
      %2028 = vmatpush1.msra.mxu0 0.0
      %2029 = vmatprep.subr.mxu0 0.0
      %2030 = vmatpush1.msra.mxu0 0.0
      %2031 = vmatprep.subr.mxu0 0.0
      %2032 = vmatpush1.msra.mxu0 0.0
      %2033 = vmatprep.subr.mxu0 0.0
      %2034 = vmatpush1.msra.mxu0 0.0
      %2035 = vmatprep.subr.mxu0 0.0
      %2036 = vmatpush1.msra.mxu0 0.0
      %2037 = vmatprep.subr.mxu0 0.0
      %2038 = vmatpush1.msra.mxu0 0.0
      %2039 = vmatprep.mubr.f32.mxu0 0.0
      %v2040 = vand.u32 %v1173, 4294901760
      %v2041 = vsub.f32 %v1173, %v2040
      %v2042 = vand.u32 %v2041, 4294901760
      %2043 = vmatmul.mubr.f32.gmra.mrb[0].mxu0 %v2042
      %v2044 = vpop.f32.mrb[0].mxu0
      %v2045 = vadd.f32 %v1835, %v2044
      %v2046 = vpop.f32.mrb[0].mxu0
      %v2047 = vadd.f32 %v1837, %v2046
      %2048 = vmatprep.mubr.f32.mxu0 0.0
      %v2049 = vand.u32 %v1176, 4294901760
      %v2050 = vsub.f32 %v1176, %v2049
      %v2051 = vand.u32 %v2050, 4294901760
      %2052 = vmatmul.mubr.f32.gmra.mrb[0].mxu0 %v2051
      %v2053 = vpop.f32.mrb[0].mxu0
      %v2054 = vadd.f32 %v1843, %v2053
      %v2055 = vpop.f32.mrb[0].mxu0
      %v2056 = vadd.f32 %v1845, %v2055
      %2057 = vmatprep.mubr.f32.mxu0 0.0
      %v2058 = vand.u32 %v1179, 4294901760
      %v2059 = vsub.f32 %v1179, %v2058
      %v2060 = vand.u32 %v2059, 4294901760
      %2061 = vmatmul.mubr.f32.gmra.mrb[0].mxu0 %v2060
      %v2062 = vpop.f32.mrb[0].mxu0
      %v2063 = vadd.f32 %v1851, %v2062
      %v2064 = vpop.f32.mrb[0].mxu0
      %v2065 = vadd.f32 %v1853, %v2064
      %2066 = vmatprep.mubr.f32.mxu0 0.0
      %v2067 = vand.u32 %v1182, 4294901760
      %v2068 = vsub.f32 %v1182, %v2067
      %v2069 = vand.u32 %v2068, 4294901760
      %2070 = vmatmul.mubr.f32.gmra.mrb[0].mxu0 %v2069
      %v2071 = vpop.f32.mrb[0].mxu0
      %v2072 = vadd.f32 %v1859, %v2071
      %v2073 = vpop.f32.mrb[0].mxu0
      %v2074 = vadd.f32 %v1861, %v2073
      %2075 = vmatprep.mubr.f32.mxu0 0.0
      %v2076 = vand.u32 %v1185, 4294901760
      %v2077 = vsub.f32 %v1185, %v2076
      %v2078 = vand.u32 %v2077, 4294901760
      %2079 = vmatmul.mubr.f32.gmra.mrb[0].mxu0 %v2078
      %v2080 = vpop.f32.mrb[0].mxu0
      %v2081 = vadd.f32 %v1867, %v2080
      %v2082 = vpop.f32.mrb[0].mxu0
      %v2083 = vadd.f32 %v1869, %v2082
      %2084 = vmatprep.mubr.f32.mxu0 0.0
      %v2085 = vand.u32 %v1188, 4294901760
      %v2086 = vsub.f32 %v1188, %v2085
      %v2087 = vand.u32 %v2086, 4294901760
      %2088 = vmatmul.mubr.f32.gmra.mrb[0].mxu0 %v2087
      %v2089 = vpop.f32.mrb[0].mxu0
      %v2090 = vadd.f32 %v1875, %v2089
      %v2091 = vpop.f32.mrb[0].mxu0
      %v2092 = vadd.f32 %v1877, %v2091
      %2093 = vmatprep.mubr.f32.mxu0 0.0
      %v2094 = vand.u32 %v1191, 4294901760
      %v2095 = vsub.f32 %v1191, %v2094
      %v2096 = vand.u32 %v2095, 4294901760
      %2097 = vmatmul.mubr.f32.gmra.mrb[0].mxu0 %v2096
      %v2098 = vpop.f32.mrb[0].mxu0
      %v2099 = vadd.f32 %v1883, %v2098
      %v2100 = vpop.f32.mrb[0].mxu0
      %v2101 = vadd.f32 %v1885, %v2100
      %2102 = vmatprep.mubr.f32.mxu0 0.0
      %v2103 = vand.u32 %v1194, 4294901760
      %v2104 = vsub.f32 %v1194, %v2103
      %v2105 = vand.u32 %v2104, 4294901760
      %2106 = vmatmul.mubr.f32.gmra.mrb[0].mxu0 %v2105
      %v2107 = vpop.f32.mrb[0].mxu0
      %v2108 = vadd.f32 %v1891, %v2107
      %v2109 = vpop.f32.mrb[0].mxu0
      %v2110 = vadd.f32 %v1893, %v2109
      %2111 = vmatprep.mubr.f32.mxu0 0.0
      %v2112 = vand.u32 %v1197, 4294901760
      %v2113 = vsub.f32 %v1197, %v2112
      %v2114 = vand.u32 %v2113, 4294901760
      %2115 = vmatmul.mubr.f32.gmra.mrb[0].mxu0 %v2114
      %v2116 = vpop.f32.mrb[0].mxu0
      %v2117 = vadd.f32 %v1899, %v2116
      %v2118 = vpop.f32.mrb[0].mxu0
      %v2119 = vadd.f32 %v1901, %v2118
      %2120 = vmatprep.mubr.f32.mxu0 0.0
      %v2121 = vand.u32 %v1200, 4294901760
      %v2122 = vsub.f32 %v1200, %v2121
      %v2123 = vand.u32 %v2122, 4294901760
      %2124 = vmatmul.mubr.f32.gmra.mrb[0].mxu0 %v2123
      %v2125 = vpop.f32.mrb[0].mxu0
      %v2126 = vadd.f32 %v1907, %v2125
      %v2127 = vpop.f32.mrb[0].mxu0
      %v2128 = vadd.f32 %v1909, %v2127
      %2129 = vmatprep.mubr.f32.mxu0 0.0
      %v2130 = vand.u32 %v1203, 4294901760
      %v2131 = vsub.f32 %v1203, %v2130
      %v2132 = vand.u32 %v2131, 4294901760
      %2133 = vmatmul.mubr.f32.gmra.mrb[0].mxu0 %v2132
      %v2134 = vpop.f32.mrb[0].mxu0
      %v2135 = vadd.f32 %v1915, %v2134
      %v2136 = vpop.f32.mrb[0].mxu0
      %v2137 = vadd.f32 %v1917, %v2136
      %2138 = vmatprep.mubr.f32.mxu0 0.0
      %v2139 = vand.u32 %v1206, 4294901760
      %v2140 = vsub.f32 %v1206, %v2139
      %v2141 = vand.u32 %v2140, 4294901760
      %2142 = vmatmul.mubr.f32.gmra.mrb[0].mxu0 %v2141
      %v2143 = vpop.f32.mrb[0].mxu0
      %v2144 = vadd.f32 %v1923, %v2143
      %v2145 = vpop.f32.mrb[0].mxu0
      %v2146 = vadd.f32 %v1925, %v2145
      %2147 = vmatprep.mubr.f32.mxu0 0.0
      %v2148 = vand.u32 %v1209, 4294901760
      %v2149 = vsub.f32 %v1209, %v2148
      %v2150 = vand.u32 %v2149, 4294901760
      %2151 = vmatmul.mubr.f32.gmra.mrb[0].mxu0 %v2150
      %v2152 = vpop.f32.mrb[0].mxu0
      %v2153 = vadd.f32 %v1931, %v2152
      %v2154 = vpop.f32.mrb[0].mxu0
      %v2155 = vadd.f32 %v1933, %v2154
      %2156 = vmatprep.mubr.f32.mxu0 0.0
      %v2157 = vand.u32 %v1212, 4294901760
      %v2158 = vsub.f32 %v1212, %v2157
      %v2159 = vand.u32 %v2158, 4294901760
      %2160 = vmatmul.mubr.f32.gmra.mrb[0].mxu0 %v2159
      %v2161 = vpop.f32.mrb[0].mxu0
      %v2162 = vadd.f32 %v1939, %v2161
      %v2163 = vpop.f32.mrb[0].mxu0
      %v2164 = vadd.f32 %v1941, %v2163
      %2165 = vmatprep.mubr.f32.mxu0 0.0
      %v2166 = vand.u32 %v1215, 4294901760
      %v2167 = vsub.f32 %v1215, %v2166
      %v2168 = vand.u32 %v2167, 4294901760
      %2169 = vmatmul.mubr.f32.gmra.mrb[0].mxu0 %v2168
      %v2170 = vpop.f32.mrb[0].mxu0
      %v2171 = vadd.f32 %v1947, %v2170
      %v2172 = vpop.f32.mrb[0].mxu0
      %v2173 = vadd.f32 %v1949, %v2172
      %2174 = vmatprep.mubr.f32.mxu0 0.0
      %v2175 = vand.u32 %v1218, 4294901760
      %v2176 = vsub.f32 %v1218, %v2175
      %v2177 = vand.u32 %v2176, 4294901760
      %2178 = vmatmul.mubr.f32.gmra.mrb[0].mxu0 %v2177
      %v2179 = vpop.f32.mrb[0].mxu0
      %v2180 = vadd.f32 %v1955, %v2179
      %v2181 = vpop.f32.mrb[0].mxu0
      %v2182 = vadd.f32 %v1957, %v2181
      %2183 = vdwg.mxu0
      %v2184 = vand.u32 %v1157, 4294901760
      %v2185 = vsub.f32 %v1157, %v2184
      %v2186 = vand.u32 %v2185, 4294901760
      %2187 = vmatprep.subr.mxu0 %v2186
      %v2188 = vand.u32 %v1156, 4294901760
      %v2189 = vsub.f32 %v1156, %v2188
      %v2190 = vand.u32 %v2189, 4294901760
      %2191 = vmatpush1.msra.mxu0 %v2190
      %v2192 = vand.u32 %v1159, 4294901760
      %v2193 = vsub.f32 %v1159, %v2192
      %v2194 = vand.u32 %v2193, 4294901760
      %2195 = vmatprep.subr.mxu0 %v2194
      %v2196 = vand.u32 %v1158, 4294901760
      %v2197 = vsub.f32 %v1158, %v2196
      %v2198 = vand.u32 %v2197, 4294901760
      %2199 = vmatpush1.msra.mxu0 %v2198
      %v2200 = vand.u32 %v1161, 4294901760
      %v2201 = vsub.f32 %v1161, %v2200
      %v2202 = vand.u32 %v2201, 4294901760
      %2203 = vmatprep.subr.mxu0 %v2202
      %v2204 = vand.u32 %v1160, 4294901760
      %v2205 = vsub.f32 %v1160, %v2204
      %v2206 = vand.u32 %v2205, 4294901760
      %2207 = vmatpush1.msra.mxu0 %v2206
      %v2208 = vand.u32 %v1163, 4294901760
      %v2209 = vsub.f32 %v1163, %v2208
      %v2210 = vand.u32 %v2209, 4294901760
      %2211 = vmatprep.subr.mxu0 %v2210
      %v2212 = vand.u32 %v1162, 4294901760
      %v2213 = vsub.f32 %v1162, %v2212
      %v2214 = vand.u32 %v2213, 4294901760
      %2215 = vmatpush1.msra.mxu0 %v2214
      %v2216 = vand.u32 %v1165, 4294901760
      %v2217 = vsub.f32 %v1165, %v2216
      %v2218 = vand.u32 %v2217, 4294901760
      %2219 = vmatprep.subr.mxu0 %v2218
      %v2220 = vand.u32 %v1164, 4294901760
      %v2221 = vsub.f32 %v1164, %v2220
      %v2222 = vand.u32 %v2221, 4294901760
      %2223 = vmatpush1.msra.mxu0 %v2222
      %v2224 = vand.u32 %v1167, 4294901760
      %v2225 = vsub.f32 %v1167, %v2224
      %v2226 = vand.u32 %v2225, 4294901760
      %2227 = vmatprep.subr.mxu0 %v2226
      %v2228 = vand.u32 %v1166, 4294901760
      %v2229 = vsub.f32 %v1166, %v2228
      %v2230 = vand.u32 %v2229, 4294901760
      %2231 = vmatpush1.msra.mxu0 %v2230
      %v2232 = vand.u32 %v1169, 4294901760
      %v2233 = vsub.f32 %v1169, %v2232
      %v2234 = vand.u32 %v2233, 4294901760
      %2235 = vmatprep.subr.mxu0 %v2234
      %v2236 = vand.u32 %v1168, 4294901760
      %v2237 = vsub.f32 %v1168, %v2236
      %v2238 = vand.u32 %v2237, 4294901760
      %2239 = vmatpush1.msra.mxu0 %v2238
      %v2240 = vand.u32 %v1171, 4294901760
      %v2241 = vsub.f32 %v1171, %v2240
      %v2242 = vand.u32 %v2241, 4294901760
      %2243 = vmatprep.subr.mxu0 %v2242
      %v2244 = vand.u32 %v1170, 4294901760
      %v2245 = vsub.f32 %v1170, %v2244
      %v2246 = vand.u32 %v2245, 4294901760
      %2247 = vmatpush1.msra.mxu0 %v2246
      %2248 = vmatprep.subr.mxu0 0.0
      %2249 = vmatpush1.msra.mxu0 0.0
      %2250 = vmatprep.subr.mxu0 0.0
      %2251 = vmatpush1.msra.mxu0 0.0
      %2252 = vmatprep.subr.mxu0 0.0
      %2253 = vmatpush1.msra.mxu0 0.0
      %2254 = vmatprep.subr.mxu0 0.0
      %2255 = vmatpush1.msra.mxu0 0.0
      %2256 = vmatprep.subr.mxu0 0.0
      %2257 = vmatpush1.msra.mxu0 0.0
      %2258 = vmatprep.subr.mxu0 0.0
      %2259 = vmatpush1.msra.mxu0 0.0
      %2260 = vmatprep.subr.mxu0 0.0
      %2261 = vmatpush1.msra.mxu0 0.0
      %2262 = vmatprep.subr.mxu0 0.0
      %2263 = vmatpush1.msra.mxu0 0.0
      %2264 = vmatprep.subr.mxu0 0.0
      %2265 = vmatpush1.msra.mxu0 0.0
      %2266 = vmatprep.subr.mxu0 0.0
      %2267 = vmatpush1.msra.mxu0 0.0
      %2268 = vmatprep.subr.mxu0 0.0
      %2269 = vmatpush1.msra.mxu0 0.0
      %2270 = vmatprep.subr.mxu0 0.0
      %2271 = vmatpush1.msra.mxu0 0.0
      %2272 = vmatprep.subr.mxu0 0.0
      %2273 = vmatpush1.msra.mxu0 0.0
      %2274 = vmatprep.subr.mxu0 0.0
      %2275 = vmatpush1.msra.mxu0 0.0
      %2276 = vmatprep.subr.mxu0 0.0
      %2277 = vmatpush1.msra.mxu0 0.0
      %2278 = vmatprep.subr.mxu0 0.0
      %2279 = vmatpush1.msra.mxu0 0.0
      %2280 = vmatprep.subr.mxu0 0.0
      %2281 = vmatpush1.msra.mxu0 0.0
      %2282 = vmatprep.subr.mxu0 0.0
      %2283 = vmatpush1.msra.mxu0 0.0
      %2284 = vmatprep.subr.mxu0 0.0
      %2285 = vmatpush1.msra.mxu0 0.0
      %2286 = vmatprep.subr.mxu0 0.0
      %2287 = vmatpush1.msra.mxu0 0.0
      %2288 = vmatprep.subr.mxu0 0.0
      %2289 = vmatpush1.msra.mxu0 0.0
      %2290 = vmatprep.subr.mxu0 0.0
      %2291 = vmatpush1.msra.mxu0 0.0
      %2292 = vmatprep.subr.mxu0 0.0
      %2293 = vmatpush1.msra.mxu0 0.0
      %2294 = vmatprep.subr.mxu0 0.0
      %2295 = vmatpush1.msra.mxu0 0.0
      %2296 = vmatprep.mubr.f32.mxu0 0.0
      %v2297 = vand.u32 %v1173, 4294901760
      %2298 = vmatmul.mubr.f32.gmra.mrb[0].mxu0 %v2297
      %v2299 = vpop.f32.mrb[0].mxu0
      %v2300 = vadd.f32 %v2045, %v2299
      %v2301 = vpop.f32.mrb[0].mxu0
      %v2302 = vadd.f32 %v2047, %v2301
      %2303 = vmatprep.mubr.f32.mxu0 0.0
      %v2304 = vand.u32 %v1176, 4294901760
      %2305 = vmatmul.mubr.f32.gmra.mrb[0].mxu0 %v2304
      %v2306 = vpop.f32.mrb[0].mxu0
      %v2307 = vadd.f32 %v2054, %v2306
      %v2308 = vpop.f32.mrb[0].mxu0
      %v2309 = vadd.f32 %v2056, %v2308
      %2310 = vmatprep.mubr.f32.mxu0 0.0
      %v2311 = vand.u32 %v1179, 4294901760
      %2312 = vmatmul.mubr.f32.gmra.mrb[0].mxu0 %v2311
      %v2313 = vpop.f32.mrb[0].mxu0
      %v2314 = vadd.f32 %v2063, %v2313
      %v2315 = vpop.f32.mrb[0].mxu0
      %v2316 = vadd.f32 %v2065, %v2315
      %2317 = vmatprep.mubr.f32.mxu0 0.0
      %v2318 = vand.u32 %v1182, 4294901760
      %2319 = vmatmul.mubr.f32.gmra.mrb[0].mxu0 %v2318
      %v2320 = vpop.f32.mrb[0].mxu0
      %v2321 = vadd.f32 %v2072, %v2320
      %v2322 = vpop.f32.mrb[0].mxu0
      %v2323 = vadd.f32 %v2074, %v2322
      %2324 = vmatprep.mubr.f32.mxu0 0.0
      %v2325 = vand.u32 %v1185, 4294901760
      %2326 = vmatmul.mubr.f32.gmra.mrb[0].mxu0 %v2325
      %v2327 = vpop.f32.mrb[0].mxu0
      %v2328 = vadd.f32 %v2081, %v2327
      %v2329 = vpop.f32.mrb[0].mxu0
      %v2330 = vadd.f32 %v2083, %v2329
      %2331 = vmatprep.mubr.f32.mxu0 0.0
      %v2332 = vand.u32 %v1188, 4294901760
      %2333 = vmatmul.mubr.f32.gmra.mrb[0].mxu0 %v2332
      %v2334 = vpop.f32.mrb[0].mxu0
      %v2335 = vadd.f32 %v2090, %v2334
      %v2336 = vpop.f32.mrb[0].mxu0
      %v2337 = vadd.f32 %v2092, %v2336
      %2338 = vmatprep.mubr.f32.mxu0 0.0
      %v2339 = vand.u32 %v1191, 4294901760
      %2340 = vmatmul.mubr.f32.gmra.mrb[0].mxu0 %v2339
      %v2341 = vpop.f32.mrb[0].mxu0
      %v2342 = vadd.f32 %v2099, %v2341
      %v2343 = vpop.f32.mrb[0].mxu0
      %v2344 = vadd.f32 %v2101, %v2343
      %2345 = vmatprep.mubr.f32.mxu0 0.0
      %v2346 = vand.u32 %v1194, 4294901760
      %2347 = vmatmul.mubr.f32.gmra.mrb[0].mxu0 %v2346
      %v2348 = vpop.f32.mrb[0].mxu0
      %v2349 = vadd.f32 %v2108, %v2348
      %v2350 = vpop.f32.mrb[0].mxu0
      %v2351 = vadd.f32 %v2110, %v2350
      %2352 = vmatprep.mubr.f32.mxu0 0.0
      %v2353 = vand.u32 %v1197, 4294901760
      %2354 = vmatmul.mubr.f32.gmra.mrb[0].mxu0 %v2353
      %v2355 = vpop.f32.mrb[0].mxu0
      %v2356 = vadd.f32 %v2117, %v2355
      %v2357 = vpop.f32.mrb[0].mxu0
      %v2358 = vadd.f32 %v2119, %v2357
      %2359 = vmatprep.mubr.f32.mxu0 0.0
      %v2360 = vand.u32 %v1200, 4294901760
      %2361 = vmatmul.mubr.f32.gmra.mrb[0].mxu0 %v2360
      %v2362 = vpop.f32.mrb[0].mxu0
      %v2363 = vadd.f32 %v2126, %v2362
      %v2364 = vpop.f32.mrb[0].mxu0
      %v2365 = vadd.f32 %v2128, %v2364
      %2366 = vmatprep.mubr.f32.mxu0 0.0
      %v2367 = vand.u32 %v1203, 4294901760
      %2368 = vmatmul.mubr.f32.gmra.mrb[0].mxu0 %v2367
      %v2369 = vpop.f32.mrb[0].mxu0
      %v2370 = vadd.f32 %v2135, %v2369
      %v2371 = vpop.f32.mrb[0].mxu0
      %v2372 = vadd.f32 %v2137, %v2371
      %2373 = vmatprep.mubr.f32.mxu0 0.0
      %v2374 = vand.u32 %v1206, 4294901760
      %2375 = vmatmul.mubr.f32.gmra.mrb[0].mxu0 %v2374
      %v2376 = vpop.f32.mrb[0].mxu0
      %v2377 = vadd.f32 %v2144, %v2376
      %v2378 = vpop.f32.mrb[0].mxu0
      %v2379 = vadd.f32 %v2146, %v2378
      %2380 = vmatprep.mubr.f32.mxu0 0.0
      %v2381 = vand.u32 %v1209, 4294901760
      %2382 = vmatmul.mubr.f32.gmra.mrb[0].mxu0 %v2381
      %v2383 = vpop.f32.mrb[0].mxu0
      %v2384 = vadd.f32 %v2153, %v2383
      %v2385 = vpop.f32.mrb[0].mxu0
      %v2386 = vadd.f32 %v2155, %v2385
      %2387 = vmatprep.mubr.f32.mxu0 0.0
      %v2388 = vand.u32 %v1212, 4294901760
      %2389 = vmatmul.mubr.f32.gmra.mrb[0].mxu0 %v2388
      %v2390 = vpop.f32.mrb[0].mxu0
      %v2391 = vadd.f32 %v2162, %v2390
      %v2392 = vpop.f32.mrb[0].mxu0
      %v2393 = vadd.f32 %v2164, %v2392
      %2394 = vmatprep.mubr.f32.mxu0 0.0
      %v2395 = vand.u32 %v1215, 4294901760
      %2396 = vmatmul.mubr.f32.gmra.mrb[0].mxu0 %v2395
      %v2397 = vpop.f32.mrb[0].mxu0
      %v2398 = vadd.f32 %v2171, %v2397
      %v2399 = vpop.f32.mrb[0].mxu0
      %v2400 = vadd.f32 %v2173, %v2399
      %2401 = vmatprep.mubr.f32.mxu0 0.0
      %v2402 = vand.u32 %v1218, 4294901760
      %2403 = vmatmul.mubr.f32.gmra.mrb[0].mxu0 %v2402
      %v2404 = vpop.f32.mrb[0].mxu0
      %v2405 = vadd.f32 %v2180, %v2404
      %v2406 = vpop.f32.mrb[0].mxu0
      %v2407 = vadd.f32 %v2182, %v2406
      %2408 = vdwg.mxu0
      %v2409 = vand.u32 %v1157, 4294901760
      %2410 = vmatprep.subr.mxu0 %v2409
      %v2411 = vand.u32 %v1156, 4294901760
      %2412 = vmatpush1.msra.mxu0 %v2411
      %v2413 = vand.u32 %v1159, 4294901760
      %2414 = vmatprep.subr.mxu0 %v2413
      %v2415 = vand.u32 %v1158, 4294901760
      %2416 = vmatpush1.msra.mxu0 %v2415
      %v2417 = vand.u32 %v1161, 4294901760
      %2418 = vmatprep.subr.mxu0 %v2417
      %v2419 = vand.u32 %v1160, 4294901760
      %2420 = vmatpush1.msra.mxu0 %v2419
      %v2421 = vand.u32 %v1163, 4294901760
      %2422 = vmatprep.subr.mxu0 %v2421
      %v2423 = vand.u32 %v1162, 4294901760
      %2424 = vmatpush1.msra.mxu0 %v2423
      %v2425 = vand.u32 %v1165, 4294901760
      %2426 = vmatprep.subr.mxu0 %v2425
      %v2427 = vand.u32 %v1164, 4294901760
      %2428 = vmatpush1.msra.mxu0 %v2427
      %v2429 = vand.u32 %v1167, 4294901760
      %2430 = vmatprep.subr.mxu0 %v2429
      %v2431 = vand.u32 %v1166, 4294901760
      %2432 = vmatpush1.msra.mxu0 %v2431
      %v2433 = vand.u32 %v1169, 4294901760
      %2434 = vmatprep.subr.mxu0 %v2433
      %v2435 = vand.u32 %v1168, 4294901760
      %2436 = vmatpush1.msra.mxu0 %v2435
      %v2437 = vand.u32 %v1171, 4294901760
      %2438 = vmatprep.subr.mxu0 %v2437
      %v2439 = vand.u32 %v1170, 4294901760
      %2440 = vmatpush1.msra.mxu0 %v2439
      %2441 = vmatprep.subr.mxu0 0.0
      %2442 = vmatpush1.msra.mxu0 0.0
      %2443 = vmatprep.subr.mxu0 0.0
      %2444 = vmatpush1.msra.mxu0 0.0
      %2445 = vmatprep.subr.mxu0 0.0
      %2446 = vmatpush1.msra.mxu0 0.0
      %2447 = vmatprep.subr.mxu0 0.0
      %2448 = vmatpush1.msra.mxu0 0.0
      %2449 = vmatprep.subr.mxu0 0.0
      %2450 = vmatpush1.msra.mxu0 0.0
      %2451 = vmatprep.subr.mxu0 0.0
      %2452 = vmatpush1.msra.mxu0 0.0
      %2453 = vmatprep.subr.mxu0 0.0
      %2454 = vmatpush1.msra.mxu0 0.0
      %2455 = vmatprep.subr.mxu0 0.0
      %2456 = vmatpush1.msra.mxu0 0.0
      %2457 = vmatprep.subr.mxu0 0.0
      %2458 = vmatpush1.msra.mxu0 0.0
      %2459 = vmatprep.subr.mxu0 0.0
      %2460 = vmatpush1.msra.mxu0 0.0
      %2461 = vmatprep.subr.mxu0 0.0
      %2462 = vmatpush1.msra.mxu0 0.0
      %2463 = vmatprep.subr.mxu0 0.0
      %2464 = vmatpush1.msra.mxu0 0.0
      %2465 = vmatprep.subr.mxu0 0.0
      %2466 = vmatpush1.msra.mxu0 0.0
      %2467 = vmatprep.subr.mxu0 0.0
      %2468 = vmatpush1.msra.mxu0 0.0
      %2469 = vmatprep.subr.mxu0 0.0
      %2470 = vmatpush1.msra.mxu0 0.0
      %2471 = vmatprep.subr.mxu0 0.0
      %2472 = vmatpush1.msra.mxu0 0.0
      %2473 = vmatprep.subr.mxu0 0.0
      %2474 = vmatpush1.msra.mxu0 0.0
      %2475 = vmatprep.subr.mxu0 0.0
      %2476 = vmatpush1.msra.mxu0 0.0
      %2477 = vmatprep.subr.mxu0 0.0
      %2478 = vmatpush1.msra.mxu0 0.0
      %2479 = vmatprep.subr.mxu0 0.0
      %2480 = vmatpush1.msra.mxu0 0.0
      %2481 = vmatprep.subr.mxu0 0.0
      %2482 = vmatpush1.msra.mxu0 0.0
      %2483 = vmatprep.subr.mxu0 0.0
      %2484 = vmatpush1.msra.mxu0 0.0
      %2485 = vmatprep.subr.mxu0 0.0
      %2486 = vmatpush1.msra.mxu0 0.0
      %2487 = vmatprep.subr.mxu0 0.0
      %2488 = vmatpush1.msra.mxu0 0.0
      %2489 = vmatprep.mubr.f32.mxu0 0.0
      %v2490 = vand.u32 %v1173, 4294901760
      %2491 = vmatmul.mubr.f32.gmra.mrb[0].mxu0 %v2490
      %v2492 = vpop.f32.mrb[0].mxu0
      %v2493 = vadd.f32 %v2300, %v2492
      %v2494 = vpop.f32.mrb[0].mxu0
      %v2495 = vadd.f32 %v2302, %v2494
      %2496 = vmatprep.mubr.f32.mxu0 0.0
      %v2497 = vand.u32 %v1176, 4294901760
      %2498 = vmatmul.mubr.f32.gmra.mrb[0].mxu0 %v2497
      %v2499 = vpop.f32.mrb[0].mxu0
      %v2500 = vadd.f32 %v2307, %v2499
      %v2501 = vpop.f32.mrb[0].mxu0
      %v2502 = vadd.f32 %v2309, %v2501
      %2503 = vmatprep.mubr.f32.mxu0 0.0
      %v2504 = vand.u32 %v1179, 4294901760
      %2505 = vmatmul.mubr.f32.gmra.mrb[0].mxu0 %v2504
      %v2506 = vpop.f32.mrb[0].mxu0
      %v2507 = vadd.f32 %v2314, %v2506
      %v2508 = vpop.f32.mrb[0].mxu0
      %v2509 = vadd.f32 %v2316, %v2508
      %2510 = vmatprep.mubr.f32.mxu0 0.0
      %v2511 = vand.u32 %v1182, 4294901760
      %2512 = vmatmul.mubr.f32.gmra.mrb[0].mxu0 %v2511
      %v2513 = vpop.f32.mrb[0].mxu0
      %v2514 = vadd.f32 %v2321, %v2513
      %v2515 = vpop.f32.mrb[0].mxu0
      %v2516 = vadd.f32 %v2323, %v2515
      %2517 = vmatprep.mubr.f32.mxu0 0.0
      %v2518 = vand.u32 %v1185, 4294901760
      %2519 = vmatmul.mubr.f32.gmra.mrb[0].mxu0 %v2518
      %v2520 = vpop.f32.mrb[0].mxu0
      %v2521 = vadd.f32 %v2328, %v2520
      %v2522 = vpop.f32.mrb[0].mxu0
      %v2523 = vadd.f32 %v2330, %v2522
      %2524 = vmatprep.mubr.f32.mxu0 0.0
      %v2525 = vand.u32 %v1188, 4294901760
      %2526 = vmatmul.mubr.f32.gmra.mrb[0].mxu0 %v2525
      %v2527 = vpop.f32.mrb[0].mxu0
      %v2528 = vadd.f32 %v2335, %v2527
      %v2529 = vpop.f32.mrb[0].mxu0
      %v2530 = vadd.f32 %v2337, %v2529
      %2531 = vmatprep.mubr.f32.mxu0 0.0
      %v2532 = vand.u32 %v1191, 4294901760
      %2533 = vmatmul.mubr.f32.gmra.mrb[0].mxu0 %v2532
      %v2534 = vpop.f32.mrb[0].mxu0
      %v2535 = vadd.f32 %v2342, %v2534
      %v2536 = vpop.f32.mrb[0].mxu0
      %v2537 = vadd.f32 %v2344, %v2536
      %2538 = vmatprep.mubr.f32.mxu0 0.0
      %v2539 = vand.u32 %v1194, 4294901760
      %2540 = vmatmul.mubr.f32.gmra.mrb[0].mxu0 %v2539
      %v2541 = vpop.f32.mrb[0].mxu0
      %v2542 = vadd.f32 %v2349, %v2541
      %v2543 = vpop.f32.mrb[0].mxu0
      %v2544 = vadd.f32 %v2351, %v2543
      %2545 = vmatprep.mubr.f32.mxu0 0.0
      %v2546 = vand.u32 %v1197, 4294901760
      %2547 = vmatmul.mubr.f32.gmra.mrb[0].mxu0 %v2546
      %v2548 = vpop.f32.mrb[0].mxu0
      %v2549 = vadd.f32 %v2356, %v2548
      %v2550 = vpop.f32.mrb[0].mxu0
      %v2551 = vadd.f32 %v2358, %v2550
      %2552 = vmatprep.mubr.f32.mxu0 0.0
      %v2553 = vand.u32 %v1200, 4294901760
      %2554 = vmatmul.mubr.f32.gmra.mrb[0].mxu0 %v2553
      %v2555 = vpop.f32.mrb[0].mxu0
      %v2556 = vadd.f32 %v2363, %v2555
      %v2557 = vpop.f32.mrb[0].mxu0
      %v2558 = vadd.f32 %v2365, %v2557
      %2559 = vmatprep.mubr.f32.mxu0 0.0
      %v2560 = vand.u32 %v1203, 4294901760
      %2561 = vmatmul.mubr.f32.gmra.mrb[0].mxu0 %v2560
      %v2562 = vpop.f32.mrb[0].mxu0
      %v2563 = vadd.f32 %v2370, %v2562
      %v2564 = vpop.f32.mrb[0].mxu0
      %v2565 = vadd.f32 %v2372, %v2564
      %2566 = vmatprep.mubr.f32.mxu0 0.0
      %v2567 = vand.u32 %v1206, 4294901760
      %2568 = vmatmul.mubr.f32.gmra.mrb[0].mxu0 %v2567
      %v2569 = vpop.f32.mrb[0].mxu0
      %v2570 = vadd.f32 %v2377, %v2569
      %v2571 = vpop.f32.mrb[0].mxu0
      %v2572 = vadd.f32 %v2379, %v2571
      %2573 = vmatprep.mubr.f32.mxu0 0.0
      %v2574 = vand.u32 %v1209, 4294901760
      %2575 = vmatmul.mubr.f32.gmra.mrb[0].mxu0 %v2574
      %v2576 = vpop.f32.mrb[0].mxu0
      %v2577 = vadd.f32 %v2384, %v2576
      %v2578 = vpop.f32.mrb[0].mxu0
      %v2579 = vadd.f32 %v2386, %v2578
      %2580 = vmatprep.mubr.f32.mxu0 0.0
      %v2581 = vand.u32 %v1212, 4294901760
      %2582 = vmatmul.mubr.f32.gmra.mrb[0].mxu0 %v2581
      %v2583 = vpop.f32.mrb[0].mxu0
      %v2584 = vadd.f32 %v2391, %v2583
      %v2585 = vpop.f32.mrb[0].mxu0
      %v2586 = vadd.f32 %v2393, %v2585
      %2587 = vmatprep.mubr.f32.mxu0 0.0
      %v2588 = vand.u32 %v1215, 4294901760
      %2589 = vmatmul.mubr.f32.gmra.mrb[0].mxu0 %v2588
      %v2590 = vpop.f32.mrb[0].mxu0
      %v2591 = vadd.f32 %v2398, %v2590
      %v2592 = vpop.f32.mrb[0].mxu0
      %v2593 = vadd.f32 %v2400, %v2592
      %2594 = vmatprep.mubr.f32.mxu0 0.0
      %v2595 = vand.u32 %v1218, 4294901760
      %2596 = vmatmul.mubr.f32.gmra.mrb[0].mxu0 %v2595
      %v2597 = vpop.f32.mrb[0].mxu0
      %v2598 = vadd.f32 %v2405, %v2597
      %v2599 = vpop.f32.mrb[0].mxu0
      %v2600 = vadd.f32 %v2407, %v2599
      %2601 = vdwg.mxu0
      %v2602 = vadd.f32 %v1124, %v2493
      %v2603 = vadd.f32 %v1125, %v2495
      %v2604 = vadd.f32 %v1126, %v2500
      %v2605 = vadd.f32 %v1127, %v2502
      %v2606 = vadd.f32 %v1128, %v2507
      %v2607 = vadd.f32 %v1129, %v2509
      %v2608 = vadd.f32 %v1130, %v2514
      %v2609 = vadd.f32 %v1131, %v2516
      %v2610 = vadd.f32 %v1132, %v2521
      %v2611 = vadd.f32 %v1133, %v2523
      %v2612 = vadd.f32 %v1134, %v2528
      %v2613 = vadd.f32 %v1135, %v2530
      %v2614 = vadd.f32 %v1136, %v2535
      %v2615 = vadd.f32 %v1137, %v2537
      %v2616 = vadd.f32 %v1138, %v2542
      %v2617 = vadd.f32 %v1139, %v2544
      %v2618 = vadd.f32 %v1140, %v2549
      %v2619 = vadd.f32 %v1141, %v2551
      %v2620 = vadd.f32 %v1142, %v2556
      %v2621 = vadd.f32 %v1143, %v2558
      %v2622 = vadd.f32 %v1144, %v2563
      %v2623 = vadd.f32 %v1145, %v2565
      %v2624 = vadd.f32 %v1146, %v2570
      %v2625 = vadd.f32 %v1147, %v2572
      %v2626 = vadd.f32 %v1148, %v2577
      %v2627 = vadd.f32 %v1149, %v2579
      %v2628 = vadd.f32 %v1150, %v2584
      %v2629 = vadd.f32 %v1151, %v2586
      %v2630 = vadd.f32 %v1152, %v2591
      %v2631 = vadd.f32 %v1153, %v2593
      %v2632 = vadd.f32 %v1154, %v2598
      %v2633 = vadd.f32 %v1155, %v2600
      %v2634 = vld [vmem:[%s5] sm:$0x3]
      %v2636 = vlaneseq
      %v2637 = vshrl.u32 %v2636, 7
      %v2638 = vsub.s32 0, %v2637
      %v2639 = vrot.slane %v2634, %v2638
      %v2640 = vlaneseq
      %v2641 = vshrl.u32 %v2640, 7
      %v2642 = vsub.s32 1, %v2641
      %v2643 = vrot.slane %v2634, %v2642
      %v2646 = vadd.f32 %v2602, %v2639
      %v2647 = vadd.f32 %v2603, %v2643
      %v2648 = vadd.f32 %v2604, %v2639
      %v2649 = vadd.f32 %v2605, %v2643
      %v2650 = vadd.f32 %v2606, %v2639
      %v2651 = vadd.f32 %v2607, %v2643
      %v2652 = vadd.f32 %v2608, %v2639
      %v2653 = vadd.f32 %v2609, %v2643
      %v2654 = vadd.f32 %v2610, %v2639
      %v2655 = vadd.f32 %v2611, %v2643
      %v2656 = vadd.f32 %v2612, %v2639
      %v2657 = vadd.f32 %v2613, %v2643
      %v2658 = vadd.f32 %v2614, %v2639
      %v2659 = vadd.f32 %v2615, %v2643
      %v2660 = vadd.f32 %v2616, %v2639
      %v2661 = vadd.f32 %v2617, %v2643
      %v2662 = vadd.f32 %v2618, %v2639
      %v2663 = vadd.f32 %v2619, %v2643
      %v2664 = vadd.f32 %v2620, %v2639
      %v2665 = vadd.f32 %v2621, %v2643
      %v2666 = vadd.f32 %v2622, %v2639
      %v2667 = vadd.f32 %v2623, %v2643
      %v2668 = vadd.f32 %v2624, %v2639
      %v2669 = vadd.f32 %v2625, %v2643
      %v2670 = vadd.f32 %v2626, %v2639
      %v2671 = vadd.f32 %v2627, %v2643
      %v2672 = vadd.f32 %v2628, %v2639
      %v2673 = vadd.f32 %v2629, %v2643
      %v2674 = vadd.f32 %v2630, %v2639
      %v2675 = vadd.f32 %v2631, %v2643
      %v2676 = vadd.f32 %v2632, %v2639
      %v2677 = vadd.f32 %v2633, %v2643
      %2678 = vst [vmem:[%s258] sm:$0xff] %v2646
      %2679 = vst.msk [vmem:[%s258 + $0x8] sm:$0xff] %vm590, %v2647
      %2680 = vst [vmem:[%s258 + $0x10] sm:$0xff] %v2648
      %2681 = vst.msk [vmem:[%s258 + $0x18] sm:$0xff] %vm590, %v2649
      %2682 = vst [vmem:[%s258 + $0x20] sm:$0xff] %v2650
      %2683 = vst.msk [vmem:[%s258 + $0x28] sm:$0xff] %vm590, %v2651
      %2684 = vst [vmem:[%s258 + $0x30] sm:$0xff] %v2652
      %2685 = vst.msk [vmem:[%s258 + $0x38] sm:$0xff] %vm590, %v2653
      %2686 = vst [vmem:[%s258 + $0x40] sm:$0xff] %v2654
      %2687 = vst.msk [vmem:[%s258 + $0x48] sm:$0xff] %vm590, %v2655
      %2688 = vst [vmem:[%s258 + $0x50] sm:$0xff] %v2656
      %2689 = vst.msk [vmem:[%s258 + $0x58] sm:$0xff] %vm590, %v2657
      %2690 = vst [vmem:[%s258 + $0x60] sm:$0xff] %v2658
      %2691 = vst.msk [vmem:[%s258 + $0x68] sm:$0xff] %vm590, %v2659
      %2692 = vst [vmem:[%s258 + $0x70] sm:$0xff] %v2660
      %2693 = vst.msk [vmem:[%s258 + $0x78] sm:$0xff] %vm590, %v2661
      %2694 = vst [vmem:[%s258 + $0x80] sm:$0xff] %v2662
      %2695 = vst.msk [vmem:[%s258 + $0x88] sm:$0xff] %vm590, %v2663
      %2696 = vst [vmem:[%s258 + $0x90] sm:$0xff] %v2664
      %2697 = vst.msk [vmem:[%s258 + $0x98] sm:$0xff] %vm590, %v2665
      %2698 = vst [vmem:[%s258 + $0xa0] sm:$0xff] %v2666
      %2699 = vst.msk [vmem:[%s258 + $0xa8] sm:$0xff] %vm590, %v2667
      %2700 = vst [vmem:[%s258 + $0xb0] sm:$0xff] %v2668
      %2701 = vst.msk [vmem:[%s258 + $0xb8] sm:$0xff] %vm590, %v2669
      %2702 = vst [vmem:[%s258 + $0xc0] sm:$0xff] %v2670
      %2703 = vst.msk [vmem:[%s258 + $0xc8] sm:$0xff] %vm590, %v2671
      %2704 = vst [vmem:[%s258 + $0xd0] sm:$0xff] %v2672
      %2705 = vst.msk [vmem:[%s258 + $0xd8] sm:$0xff] %vm590, %v2673
      %2706 = vst [vmem:[%s258 + $0xe0] sm:$0xff] %v2674
      %2707 = vst.msk [vmem:[%s258 + $0xe8] sm:$0xff] %vm590, %v2675
      %2708 = vst [vmem:[%s258 + $0xf0] sm:$0xff] %v2676
      %2709 = vst.msk [vmem:[%s258 + $0xf8] sm:$0xff] %vm590, %v2677
      %s2710 = smul.u32 8, %s17
      %p2711 = scmp.lt.s32.totalorder %s2710, 31
      %s2712 = scalar_select %p2711, %s2710, 31
      %s2713 = smul.addr %s2712, 4
      %s2714 = smul.addr %s2713, 8
      %s2715 = scalar_lea.vmem %s6, %s2714
      // Predicated region
      $region45: #{dense_block2d.1} parent=43 // pred_check
        %p2716 = pneg %p166
      $region46: #{dense_block2d.1} parent=43 // pred_check_branch
        %2718 = sbr.rel (%p2716) target = $region48
      $region47: #{dense_block2d.1} parent=43 // pred_region
        %s2719 = smul.u32 8, %s17
      $region48: #{dense_block2d.1} parent=43 // pred_fallthru
        _
    $region44: #{dense_block2d.1} parent=5 // pred_fallthru
      _
    %p2720 = scmp.le.s32.totalorder 2, %s12
    // Predicated region
    $region49: #{dense_block2d.1} parent=5 // pred_check
      %p2721 = pneg %p2720
    $region50: #{dense_block2d.1} parent=5 // pred_check_branch
      %2723 = sbr.rel (%p2721) target = $region52
    $region51: #{dense_block2d.1} parent=5 // pred_region
      %s2724 = ssub.s32 %s12, 2
      // Predicated region
      $region53: #{dense_block2d.1} parent=51 // pred_check
        %p2725 = pneg %p172
      $region54: #{dense_block2d.1} parent=51 // pred_check_branch
        %2727 = sbr.rel (%p2725) target = $region56
      $region55: #{dense_block2d.1} parent=51 // pred_region
        %s2728 = smul.u32 8, %s18
        %p2729 = scmp.lt.s32.totalorder %s2728, 31
        %s2730 = scalar_select %p2729, %s2728, 31
        %s2731 = smul.addr %s2730, 4
        %s2732 = smul.addr %s2731, 8
        %s2733 = scalar_lea.vmem %s6, %s2732
      $region56: #{dense_block2d.1} parent=51 // pred_fallthru
        _
    $region52: #{dense_block2d.1} parent=5 // pred_fallthru
      _
  $region6: #{dense_block2d.1} parent=0 // loop_footer
    %s16 = sadd.s32 1, %s12
  $region7: #{dense_block2d.1} parent=0 // loop_footer_branch
    %11 = sbr.rel target = $region3
  $region8: #{dense_block2d.1} parent=0 // loop_exit
    _

</llo_original>
